<compile_context>
chip_gen: v7x
topology: tpu7x:2x2x1
jax: 0.10.0
libtpu: 0.0.40
codegen_flags: <defaults>
</compile_context>

<pallas_src>
import functools

import jax
import jax.numpy as jnp
from jax import lax
from jax.experimental import pallas as pl
from jax.experimental.pallas import tpu as pltpu


def _conv3x3_kernel(x_ref, w_ref, b_ref, o_ref, *, H, W):
    """3x3 'same' convolution on flattened-spatial NCHW data.

    x_ref : (Nb, Cin, H*W)   VMEM  input block (lane-dense spatial axis)
    w_ref : (Cout*Cin*9,)    SMEM  conv weights, OIHW order flattened
    b_ref : (Cout,)          SMEM  biases
    o_ref : (Nb, Cout, H*W)  VMEM  output block
    """
    Nb, Cin, HW = x_ref.shape
    Cout = o_ref.shape[1]

    # Flattened-position iota and derived column index.  Row conditions can be
    # written directly on p (p >= W, p < (H-1)*W), so no division is needed.
    p = lax.broadcasted_iota(jnp.int32, (Cin, HW), 1)
    if W & (W - 1) == 0:                       # power-of-two fast path
        col = p & (W - 1)
    else:
        col = p % W

    for n in range(Nb):
        x_img = x_ref[n].astype(jnp.float32)   # (Cin, HW)
        accs = [None] * Cout                   # Cout live accumulators only

        for kh in range(3):
            dh = kh - 1
            for kw in range(3):
                dw = kw - 1
                d = dh * W + dw                # flattened tap offset
                # shifted[:, q] == x_img[:, q + d] (wrap-around masked below).
                if d == 0:
                    shifted = x_img
                else:
                    shifted = pltpu.roll(x_img, shift=(-d) % HW, axis=1)

                conds = []
                if dh < 0:
                    conds.append(p >= W)               # row >= 1
                elif dh > 0:
                    conds.append(p < (H - 1) * W)      # row <= H-2
                if dw < 0:
                    conds.append(col >= 1)             # col >= 1
                elif dw > 0:
                    conds.append(col <= W - 2)         # col <= W-2
                if conds:
                    valid = conds[0]
                    for c in conds[1:]:
                        valid = jnp.logical_and(valid, c)
                    tap = jnp.where(valid, shifted, 0.0)
                else:
                    tap = shifted                      # center tap: no border

                # Reuse this tap for every (ci, o) pair before moving on.
                for ci in range(Cin):
                    t = tap[ci:ci + 1, :]              # (1, HW)
                    for o in range(Cout):
                        w_s = w_ref[(o * Cin + ci) * 9 + kh * 3 + kw]
                        term = w_s * t
                        if accs[o] is None:
                            accs[o] = term + b_ref[o]  # fold bias into 1st tap
                        else:
                            accs[o] = accs[o] + term

        for o in range(Cout):
            o_ref[n, o:o + 1, :] = accs[o].astype(o_ref.dtype)


def simple_net_forward(x_nchw, weight_oihw, bias):
    """Forward pass of SimpleNet: y = Conv2d(3, 3, k=3, pad=1)(x).

    x_nchw:      (N, Cin, H, W)    float32 (PyTorch NCHW convention)
    weight_oihw: (Cout, Cin, 3, 3) float32 (PyTorch conv weight layout)
    bias:        (Cout,)           float32
    returns:     (N, Cout, H, W)   float32
    """
    N, Cin, H, W = x_nchw.shape
    Cout = weight_oihw.shape[0]
    HW = H * W
    itemsize = jnp.dtype(x_nchw.dtype).itemsize

    # Free contiguous reshape: spatial axis goes onto the 128-lane axis.
    x_flat = x_nchw.reshape(N, Cin, HW)
    w_flat = weight_oihw.reshape(Cout * Cin * 9).astype(jnp.float32)
    b_flat = bias.reshape(Cout).astype(jnp.float32)

    # Batch block: amortize per-grid-step overhead, but keep each step's input
    # under ~1 MiB so double-buffered in+out fits every generation's scoped
    # VMEM defaults, and the unrolled kernel body stays small.
    per_image = Cin * HW * itemsize
    nb = 1
    for cand in range(1, min(N, 8) + 1):
        if N % cand == 0 and cand * per_image <= (1 << 20):
            nb = cand

    kernel = functools.partial(_conv3x3_kernel, H=H, W=W)

    cost = pl.CostEstimate(
        flops=2 * N * HW * Cout * Cin * 9,
        transcendentals=0,
        bytes_accessed=(N * Cin * HW + N * Cout * HW) * itemsize
        + (w_flat.size + b_flat.size) * 4,
    )

    y_flat = pl.pallas_call(
        kernel,
        out_shape=jax.ShapeDtypeStruct((N, Cout, HW), x_nchw.dtype),
        grid=(N // nb,),
        in_specs=[
            pl.BlockSpec((nb, Cin, HW), lambda n: (n, 0, 0)),
            pl.BlockSpec(memory_space=pltpu.MemorySpace.SMEM),  # weights (scalars)
            pl.BlockSpec(memory_space=pltpu.MemorySpace.SMEM),  # bias    (scalars)
        ],
        out_specs=pl.BlockSpec((nb, Cout, HW), lambda n: (n, 0, 0)),
        compiler_params=pltpu.CompilerParams(
            dimension_semantics=("parallel",),
            vmem_limit_bytes=32 * 1024 * 1024,
        ),
        cost_estimate=cost,
    )(x_flat, w_flat, b_flat)

    return y_flat.reshape(N, Cout, H, W)


def make_simple_net_params():
    """Deterministic params matching SimpleNet._initializeWeights().

    nn.init.dirac_(weight): w[o, i, 1, 1] = 1 iff o == i; bias = 0.
    """
    Cout, Cin, K = 3, 3, 3
    assert Cout == Cin, "dirac identity construction assumes Cout == Cin"
    weight = jnp.zeros((Cout, Cin, K, K), jnp.float32)
    weight = weight.at[:, :, 1, 1].set(jnp.eye(Cin, dtype=jnp.float32))
    bias = jnp.zeros((Cout,), jnp.float32)
    return weight, bias


if __name__ == "__main__":
    key = jax.random.PRNGKey(0)
    kx, kw, kb = jax.random.split(key, 3)

    # Small shapes consistent with the module: Conv2d(3 -> 3), NCHW input.
    N, C, H, W = 2, 3, 16, 16
    x = jax.random.normal(kx, (N, C, H, W), dtype=jnp.float32)

    # 1) The module's actual parameters (dirac weights, zero bias) -> identity.
    weight, bias = make_simple_net_params()
    y = jax.block_until_ready(simple_net_forward(x, weight, bias))
    assert y.shape == x.shape
    assert jnp.allclose(y, x, atol=1e-5), "dirac conv should reproduce the input"

    # 2) Random-weight check against XLA's convolution as reference.
    w_rand = jax.random.normal(kw, (C, C, 3, 3), dtype=jnp.float32)
    b_rand = jax.random.normal(kb, (C,), dtype=jnp.float32)
    y_pal = jax.block_until_ready(simple_net_forward(x, w_rand, b_rand))
    y_ref = jax.lax.conv_general_dilated(
        x, w_rand, window_strides=(1, 1), padding="SAME",
        dimension_numbers=("NCHW", "OIHW", "NCHW"),
    ) + b_rand[None, :, None, None]
    assert jnp.allclose(y_pal, y_ref, atol=1e-4, rtol=1e-4), "random-weight conv mismatch"

    print("KERNEL_OK")
</pallas_src>

<mosaic_0001>
module attributes {stable_mosaic.version = 11 : i64} {
  func.func @_conv3x3_kernel(%arg0: i32, %arg1: memref<2x3x256xf32, #tpu.memory_space<vmem>>, %arg2: memref<81xf32, #tpu.memory_space<smem>>, %arg3: memref<3xf32, #tpu.memory_space<smem>>, %arg4: memref<2x3x256xf32, #tpu.memory_space<vmem>>) attributes {dimension_semantics = [#tpu.dimension_semantics<parallel>], iteration_bounds = array<i64: 1>, scalar_prefetch = 0 : i64, scratch_operands = 0 : i64, tpu.core_type = #tpu.core_type<tc>, window_params = [{transform_indices = @transform_0, window_bounds = array<i64: 2, 3, 256>}, {transform_indices = @transform_1, window_bounds = array<i64: 81>}, {transform_indices = @transform_2, window_bounds = array<i64: 3>}, {transform_indices = @transform_3, window_bounds = array<i64: 2, 3, 256>}]} {
    %0 = tpu.iota {dimensions = array<i32: 1>} : vector<3x256xi32>
    %c15_i32 = arith.constant 15 : i32
    %1 = vector.broadcast %c15_i32 : i32 to vector<3x256xi32>
    %2 = arith.andi %0, %1 : vector<3x256xi32>
    %c0 = arith.constant 0 : index
    %c0_0 = arith.constant 0 : index
    %c0_1 = arith.constant 0 : index
    %3 = vector.load %arg1[%c0, %c0_0, %c0_1] : memref<2x3x256xf32, #tpu.memory_space<vmem>>, vector<1x3x256xf32>
    %4 = vector.shape_cast %3 : vector<1x3x256xf32> to vector<3x256xf32>
    %c17_i32 = arith.constant 17 : i32
    %5 = tpu.dynamic_rotate %4 by %c17_i32 dim 1 : vector<3x256xf32>, i32 -> vector<3x256xf32>
    %c16_i32 = arith.constant 16 : i32
    %6 = vector.broadcast %c16_i32 : i32 to vector<3x256xi32>
    %7 = arith.cmpi sge, %0, %6 : vector<3x256xi32>
    %c1_i32 = arith.constant 1 : i32
    %8 = vector.broadcast %c1_i32 : i32 to vector<3x256xi32>
    %9 = arith.cmpi sge, %2, %8 : vector<3x256xi32>
    %10 = arith.andi %7, %9 : vector<3x256xi1>
    %cst = arith.constant 0.000000e+00 : f32
    %11 = vector.broadcast %cst : f32 to vector<3x256xf32>
    %12 = arith.select %10, %5, %11 : vector<3x256xi1>, vector<3x256xf32>
    %13 = vector.extract_strided_slice %12 {offsets = [0, 0], sizes = [1, 256], strides = [1, 1]} : vector<3x256xf32> to vector<1x256xf32>
    %c0_2 = arith.constant 0 : index
    %14 = memref.load %arg2[%c0_2] : memref<81xf32, #tpu.memory_space<smem>>
    %15 = vector.broadcast %14 : f32 to vector<1x256xf32>
    %16 = arith.mulf %15, %13 : vector<1x256xf32>
    %c0_3 = arith.constant 0 : index
    %17 = memref.load %arg3[%c0_3] : memref<3xf32, #tpu.memory_space<smem>>
    %18 = vector.broadcast %17 : f32 to vector<1x256xf32>
    %19 = arith.addf %16, %18 : vector<1x256xf32>
    %c27 = arith.constant 27 : index
    %20 = memref.load %arg2[%c27] : memref<81xf32, #tpu.memory_space<smem>>
    %21 = vector.broadcast %20 : f32 to vector<1x256xf32>
    %22 = arith.mulf %21, %13 : vector<1x256xf32>
    %c1 = arith.constant 1 : index
    %23 = memref.load %arg3[%c1] : memref<3xf32, #tpu.memory_space<smem>>
    %24 = vector.broadcast %23 : f32 to vector<1x256xf32>
    %25 = arith.addf %22, %24 : vector<1x256xf32>
    %c54 = arith.constant 54 : index
    %26 = memref.load %arg2[%c54] : memref<81xf32, #tpu.memory_space<smem>>
    %27 = vector.broadcast %26 : f32 to vector<1x256xf32>
    %28 = arith.mulf %27, %13 : vector<1x256xf32>
    %c2 = arith.constant 2 : index
    %29 = memref.load %arg3[%c2] : memref<3xf32, #tpu.memory_space<smem>>
    %30 = vector.broadcast %29 : f32 to vector<1x256xf32>
    %31 = arith.addf %28, %30 : vector<1x256xf32>
    %32 = vector.extract_strided_slice %12 {offsets = [1, 0], sizes = [1, 256], strides = [1, 1]} : vector<3x256xf32> to vector<1x256xf32>
    %c9 = arith.constant 9 : index
    %33 = memref.load %arg2[%c9] : memref<81xf32, #tpu.memory_space<smem>>
    %34 = vector.broadcast %33 : f32 to vector<1x256xf32>
    %35 = arith.mulf %34, %32 : vector<1x256xf32>
    %36 = arith.addf %19, %35 : vector<1x256xf32>
    %c36 = arith.constant 36 : index
    %37 = memref.load %arg2[%c36] : memref<81xf32, #tpu.memory_space<smem>>
    %38 = vector.broadcast %37 : f32 to vector<1x256xf32>
    %39 = arith.mulf %38, %32 : vector<1x256xf32>
    %40 = arith.addf %25, %39 : vector<1x256xf32>
    %c63 = arith.constant 63 : index
    %41 = memref.load %arg2[%c63] : memref<81xf32, #tpu.memory_space<smem>>
    %42 = vector.broadcast %41 : f32 to vector<1x256xf32>
    %43 = arith.mulf %42, %32 : vector<1x256xf32>
    %44 = arith.addf %31, %43 : vector<1x256xf32>
    %45 = vector.extract_strided_slice %12 {offsets = [2, 0], sizes = [1, 256], strides = [1, 1]} : vector<3x256xf32> to vector<1x256xf32>
    %c18 = arith.constant 18 : index
    %46 = memref.load %arg2[%c18] : memref<81xf32, #tpu.memory_space<smem>>
    %47 = vector.broadcast %46 : f32 to vector<1x256xf32>
    %48 = arith.mulf %47, %45 : vector<1x256xf32>
    %49 = arith.addf %36, %48 : vector<1x256xf32>
    %c45 = arith.constant 45 : index
    %50 = memref.load %arg2[%c45] : memref<81xf32, #tpu.memory_space<smem>>
    %51 = vector.broadcast %50 : f32 to vector<1x256xf32>
    %52 = arith.mulf %51, %45 : vector<1x256xf32>
    %53 = arith.addf %40, %52 : vector<1x256xf32>
    %c72 = arith.constant 72 : index
    %54 = memref.load %arg2[%c72] : memref<81xf32, #tpu.memory_space<smem>>
    %55 = vector.broadcast %54 : f32 to vector<1x256xf32>
    %56 = arith.mulf %55, %45 : vector<1x256xf32>
    %57 = arith.addf %44, %56 : vector<1x256xf32>
    %c16_i32_4 = arith.constant 16 : i32
    %58 = tpu.dynamic_rotate %4 by %c16_i32_4 dim 1 : vector<3x256xf32>, i32 -> vector<3x256xf32>
    %c16_i32_5 = arith.constant 16 : i32
    %59 = vector.broadcast %c16_i32_5 : i32 to vector<3x256xi32>
    %60 = arith.cmpi sge, %0, %59 : vector<3x256xi32>
    %cst_6 = arith.constant 0.000000e+00 : f32
    %61 = vector.broadcast %cst_6 : f32 to vector<3x256xf32>
    %62 = arith.select %60, %58, %61 : vector<3x256xi1>, vector<3x256xf32>
    %63 = vector.extract_strided_slice %62 {offsets = [0, 0], sizes = [1, 256], strides = [1, 1]} : vector<3x256xf32> to vector<1x256xf32>
    %c1_7 = arith.constant 1 : index
    %64 = memref.load %arg2[%c1_7] : memref<81xf32, #tpu.memory_space<smem>>
    %65 = vector.broadcast %64 : f32 to vector<1x256xf32>
    %66 = arith.mulf %65, %63 : vector<1x256xf32>
    %67 = arith.addf %49, %66 : vector<1x256xf32>
    %c28 = arith.constant 28 : index
    %68 = memref.load %arg2[%c28] : memref<81xf32, #tpu.memory_space<smem>>
    %69 = vector.broadcast %68 : f32 to vector<1x256xf32>
    %70 = arith.mulf %69, %63 : vector<1x256xf32>
    %71 = arith.addf %53, %70 : vector<1x256xf32>
    %c55 = arith.constant 55 : index
    %72 = memref.load %arg2[%c55] : memref<81xf32, #tpu.memory_space<smem>>
    %73 = vector.broadcast %72 : f32 to vector<1x256xf32>
    %74 = arith.mulf %73, %63 : vector<1x256xf32>
    %75 = arith.addf %57, %74 : vector<1x256xf32>
    %76 = vector.extract_strided_slice %62 {offsets = [1, 0], sizes = [1, 256], strides = [1, 1]} : vector<3x256xf32> to vector<1x256xf32>
    %c10 = arith.constant 10 : index
    %77 = memref.load %arg2[%c10] : memref<81xf32, #tpu.memory_space<smem>>
    %78 = vector.broadcast %77 : f32 to vector<1x256xf32>
    %79 = arith.mulf %78, %76 : vector<1x256xf32>
    %80 = arith.addf %67, %79 : vector<1x256xf32>
    %c37 = arith.constant 37 : index
    %81 = memref.load %arg2[%c37] : memref<81xf32, #tpu.memory_space<smem>>
    %82 = vector.broadcast %81 : f32 to vector<1x256xf32>
    %83 = arith.mulf %82, %76 : vector<1x256xf32>
    %84 = arith.addf %71, %83 : vector<1x256xf32>
    %c64 = arith.constant 64 : index
    %85 = memref.load %arg2[%c64] : memref<81xf32, #tpu.memory_space<smem>>
    %86 = vector.broadcast %85 : f32 to vector<1x256xf32>
    %87 = arith.mulf %86, %76 : vector<1x256xf32>
    %88 = arith.addf %75, %87 : vector<1x256xf32>
    %89 = vector.extract_strided_slice %62 {offsets = [2, 0], sizes = [1, 256], strides = [1, 1]} : vector<3x256xf32> to vector<1x256xf32>
    %c19 = arith.constant 19 : index
    %90 = memref.load %arg2[%c19] : memref<81xf32, #tpu.memory_space<smem>>
    %91 = vector.broadcast %90 : f32 to vector<1x256xf32>
    %92 = arith.mulf %91, %89 : vector<1x256xf32>
    %93 = arith.addf %80, %92 : vector<1x256xf32>
    %c46 = arith.constant 46 : index
    %94 = memref.load %arg2[%c46] : memref<81xf32, #tpu.memory_space<smem>>
    %95 = vector.broadcast %94 : f32 to vector<1x256xf32>
    %96 = arith.mulf %95, %89 : vector<1x256xf32>
    %97 = arith.addf %84, %96 : vector<1x256xf32>
    %c73 = arith.constant 73 : index
    %98 = memref.load %arg2[%c73] : memref<81xf32, #tpu.memory_space<smem>>
    %99 = vector.broadcast %98 : f32 to vector<1x256xf32>
    %100 = arith.mulf %99, %89 : vector<1x256xf32>
    %101 = arith.addf %88, %100 : vector<1x256xf32>
    %c15_i32_8 = arith.constant 15 : i32
    %102 = tpu.dynamic_rotate %4 by %c15_i32_8 dim 1 : vector<3x256xf32>, i32 -> vector<3x256xf32>
    %c16_i32_9 = arith.constant 16 : i32
    %103 = vector.broadcast %c16_i32_9 : i32 to vector<3x256xi32>
    %104 = arith.cmpi sge, %0, %103 : vector<3x256xi32>
    %c14_i32 = arith.constant 14 : i32
    %105 = vector.broadcast %c14_i32 : i32 to vector<3x256xi32>
    %106 = arith.cmpi sle, %2, %105 : vector<3x256xi32>
    %107 = arith.andi %104, %106 : vector<3x256xi1>
    %cst_10 = arith.constant 0.000000e+00 : f32
    %108 = vector.broadcast %cst_10 : f32 to vector<3x256xf32>
    %109 = arith.select %107, %102, %108 : vector<3x256xi1>, vector<3x256xf32>
    %110 = vector.extract_strided_slice %109 {offsets = [0, 0], sizes = [1, 256], strides = [1, 1]} : vector<3x256xf32> to vector<1x256xf32>
    %c2_11 = arith.constant 2 : index
    %111 = memref.load %arg2[%c2_11] : memref<81xf32, #tpu.memory_space<smem>>
    %112 = vector.broadcast %111 : f32 to vector<1x256xf32>
    %113 = arith.mulf %112, %110 : vector<1x256xf32>
    %114 = arith.addf %93, %113 : vector<1x256xf32>
    %c29 = arith.constant 29 : index
    %115 = memref.load %arg2[%c29] : memref<81xf32, #tpu.memory_space<smem>>
    %116 = vector.broadcast %115 : f32 to vector<1x256xf32>
    %117 = arith.mulf %116, %110 : vector<1x256xf32>
    %118 = arith.addf %97, %117 : vector<1x256xf32>
    %c56 = arith.constant 56 : index
    %119 = memref.load %arg2[%c56] : memref<81xf32, #tpu.memory_space<smem>>
    %120 = vector.broadcast %119 : f32 to vector<1x256xf32>
    %121 = arith.mulf %120, %110 : vector<1x256xf32>
    %122 = arith.addf %101, %121 : vector<1x256xf32>
    %123 = vector.extract_strided_slice %109 {offsets = [1, 0], sizes = [1, 256], strides = [1, 1]} : vector<3x256xf32> to vector<1x256xf32>
    %c11 = arith.constant 11 : index
    %124 = memref.load %arg2[%c11] : memref<81xf32, #tpu.memory_space<smem>>
    %125 = vector.broadcast %124 : f32 to vector<1x256xf32>
    %126 = arith.mulf %125, %123 : vector<1x256xf32>
    %127 = arith.addf %114, %126 : vector<1x256xf32>
    %c38 = arith.constant 38 : index
    %128 = memref.load %arg2[%c38] : memref<81xf32, #tpu.memory_space<smem>>
    %129 = vector.broadcast %128 : f32 to vector<1x256xf32>
    %130 = arith.mulf %129, %123 : vector<1x256xf32>
    %131 = arith.addf %118, %130 : vector<1x256xf32>
    %c65 = arith.constant 65 : index
    %132 = memref.load %arg2[%c65] : memref<81xf32, #tpu.memory_space<smem>>
    %133 = vector.broadcast %132 : f32 to vector<1x256xf32>
    %134 = arith.mulf %133, %123 : vector<1x256xf32>
    %135 = arith.addf %122, %134 : vector<1x256xf32>
    %136 = vector.extract_strided_slice %109 {offsets = [2, 0], sizes = [1, 256], strides = [1, 1]} : vector<3x256xf32> to vector<1x256xf32>
    %c20 = arith.constant 20 : index
    %137 = memref.load %arg2[%c20] : memref<81xf32, #tpu.memory_space<smem>>
    %138 = vector.broadcast %137 : f32 to vector<1x256xf32>
    %139 = arith.mulf %138, %136 : vector<1x256xf32>
    %140 = arith.addf %127, %139 : vector<1x256xf32>
    %c47 = arith.constant 47 : index
    %141 = memref.load %arg2[%c47] : memref<81xf32, #tpu.memory_space<smem>>
    %142 = vector.broadcast %141 : f32 to vector<1x256xf32>
    %143 = arith.mulf %142, %136 : vector<1x256xf32>
    %144 = arith.addf %131, %143 : vector<1x256xf32>
    %c74 = arith.constant 74 : index
    %145 = memref.load %arg2[%c74] : memref<81xf32, #tpu.memory_space<smem>>
    %146 = vector.broadcast %145 : f32 to vector<1x256xf32>
    %147 = arith.mulf %146, %136 : vector<1x256xf32>
    %148 = arith.addf %135, %147 : vector<1x256xf32>
    %c1_i32_12 = arith.constant 1 : i32
    %149 = tpu.dynamic_rotate %4 by %c1_i32_12 dim 1 : vector<3x256xf32>, i32 -> vector<3x256xf32>
    %c1_i32_13 = arith.constant 1 : i32
    %150 = vector.broadcast %c1_i32_13 : i32 to vector<3x256xi32>
    %151 = arith.cmpi sge, %2, %150 : vector<3x256xi32>
    %cst_14 = arith.constant 0.000000e+00 : f32
    %152 = vector.broadcast %cst_14 : f32 to vector<3x256xf32>
    %153 = arith.select %151, %149, %152 : vector<3x256xi1>, vector<3x256xf32>
    %154 = vector.extract_strided_slice %153 {offsets = [0, 0], sizes = [1, 256], strides = [1, 1]} : vector<3x256xf32> to vector<1x256xf32>
    %c3 = arith.constant 3 : index
    %155 = memref.load %arg2[%c3] : memref<81xf32, #tpu.memory_space<smem>>
    %156 = vector.broadcast %155 : f32 to vector<1x256xf32>
    %157 = arith.mulf %156, %154 : vector<1x256xf32>
    %158 = arith.addf %140, %157 : vector<1x256xf32>
    %c30 = arith.constant 30 : index
    %159 = memref.load %arg2[%c30] : memref<81xf32, #tpu.memory_space<smem>>
    %160 = vector.broadcast %159 : f32 to vector<1x256xf32>
    %161 = arith.mulf %160, %154 : vector<1x256xf32>
    %162 = arith.addf %144, %161 : vector<1x256xf32>
    %c57 = arith.constant 57 : index
    %163 = memref.load %arg2[%c57] : memref<81xf32, #tpu.memory_space<smem>>
    %164 = vector.broadcast %163 : f32 to vector<1x256xf32>
    %165 = arith.mulf %164, %154 : vector<1x256xf32>
    %166 = arith.addf %148, %165 : vector<1x256xf32>
    %167 = vector.extract_strided_slice %153 {offsets = [1, 0], sizes = [1, 256], strides = [1, 1]} : vector<3x256xf32> to vector<1x256xf32>
    %c12 = arith.constant 12 : index
    %168 = memref.load %arg2[%c12] : memref<81xf32, #tpu.memory_space<smem>>
    %169 = vector.broadcast %168 : f32 to vector<1x256xf32>
    %170 = arith.mulf %169, %167 : vector<1x256xf32>
    %171 = arith.addf %158, %170 : vector<1x256xf32>
    %c39 = arith.constant 39 : index
    %172 = memref.load %arg2[%c39] : memref<81xf32, #tpu.memory_space<smem>>
    %173 = vector.broadcast %172 : f32 to vector<1x256xf32>
    %174 = arith.mulf %173, %167 : vector<1x256xf32>
    %175 = arith.addf %162, %174 : vector<1x256xf32>
    %c66 = arith.constant 66 : index
    %176 = memref.load %arg2[%c66] : memref<81xf32, #tpu.memory_space<smem>>
    %177 = vector.broadcast %176 : f32 to vector<1x256xf32>
    %178 = arith.mulf %177, %167 : vector<1x256xf32>
    %179 = arith.addf %166, %178 : vector<1x256xf32>
    %180 = vector.extract_strided_slice %153 {offsets = [2, 0], sizes = [1, 256], strides = [1, 1]} : vector<3x256xf32> to vector<1x256xf32>
    %c21 = arith.constant 21 : index
    %181 = memref.load %arg2[%c21] : memref<81xf32, #tpu.memory_space<smem>>
    %182 = vector.broadcast %181 : f32 to vector<1x256xf32>
    %183 = arith.mulf %182, %180 : vector<1x256xf32>
    %184 = arith.addf %171, %183 : vector<1x256xf32>
    %c48 = arith.constant 48 : index
    %185 = memref.load %arg2[%c48] : memref<81xf32, #tpu.memory_space<smem>>
    %186 = vector.broadcast %185 : f32 to vector<1x256xf32>
    %187 = arith.mulf %186, %180 : vector<1x256xf32>
    %188 = arith.addf %175, %187 : vector<1x256xf32>
    %c75 = arith.constant 75 : index
    %189 = memref.load %arg2[%c75] : memref<81xf32, #tpu.memory_space<smem>>
    %190 = vector.broadcast %189 : f32 to vector<1x256xf32>
    %191 = arith.mulf %190, %180 : vector<1x256xf32>
    %192 = arith.addf %179, %191 : vector<1x256xf32>
    %193 = vector.extract_strided_slice %4 {offsets = [0, 0], sizes = [1, 256], strides = [1, 1]} : vector<3x256xf32> to vector<1x256xf32>
    %c4 = arith.constant 4 : index
    %194 = memref.load %arg2[%c4] : memref<81xf32, #tpu.memory_space<smem>>
    %195 = vector.broadcast %194 : f32 to vector<1x256xf32>
    %196 = arith.mulf %195, %193 : vector<1x256xf32>
    %197 = arith.addf %184, %196 : vector<1x256xf32>
    %c31 = arith.constant 31 : index
    %198 = memref.load %arg2[%c31] : memref<81xf32, #tpu.memory_space<smem>>
    %199 = vector.broadcast %198 : f32 to vector<1x256xf32>
    %200 = arith.mulf %199, %193 : vector<1x256xf32>
    %201 = arith.addf %188, %200 : vector<1x256xf32>
    %c58 = arith.constant 58 : index
    %202 = memref.load %arg2[%c58] : memref<81xf32, #tpu.memory_space<smem>>
    %203 = vector.broadcast %202 : f32 to vector<1x256xf32>
    %204 = arith.mulf %203, %193 : vector<1x256xf32>
    %205 = arith.addf %192, %204 : vector<1x256xf32>
    %206 = vector.extract_strided_slice %4 {offsets = [1, 0], sizes = [1, 256], strides = [1, 1]} : vector<3x256xf32> to vector<1x256xf32>
    %c13 = arith.constant 13 : index
    %207 = memref.load %arg2[%c13] : memref<81xf32, #tpu.memory_space<smem>>
    %208 = vector.broadcast %207 : f32 to vector<1x256xf32>
    %209 = arith.mulf %208, %206 : vector<1x256xf32>
    %210 = arith.addf %197, %209 : vector<1x256xf32>
    %c40 = arith.constant 40 : index
    %211 = memref.load %arg2[%c40] : memref<81xf32, #tpu.memory_space<smem>>
    %212 = vector.broadcast %211 : f32 to vector<1x256xf32>
    %213 = arith.mulf %212, %206 : vector<1x256xf32>
    %214 = arith.addf %201, %213 : vector<1x256xf32>
    %c67 = arith.constant 67 : index
    %215 = memref.load %arg2[%c67] : memref<81xf32, #tpu.memory_space<smem>>
    %216 = vector.broadcast %215 : f32 to vector<1x256xf32>
    %217 = arith.mulf %216, %206 : vector<1x256xf32>
    %218 = arith.addf %205, %217 : vector<1x256xf32>
    %219 = vector.extract_strided_slice %4 {offsets = [2, 0], sizes = [1, 256], strides = [1, 1]} : vector<3x256xf32> to vector<1x256xf32>
    %c22 = arith.constant 22 : index
    %220 = memref.load %arg2[%c22] : memref<81xf32, #tpu.memory_space<smem>>
    %221 = vector.broadcast %220 : f32 to vector<1x256xf32>
    %222 = arith.mulf %221, %219 : vector<1x256xf32>
    %223 = arith.addf %210, %222 : vector<1x256xf32>
    %c49 = arith.constant 49 : index
    %224 = memref.load %arg2[%c49] : memref<81xf32, #tpu.memory_space<smem>>
    %225 = vector.broadcast %224 : f32 to vector<1x256xf32>
    %226 = arith.mulf %225, %219 : vector<1x256xf32>
    %227 = arith.addf %214, %226 : vector<1x256xf32>
    %c76 = arith.constant 76 : index
    %228 = memref.load %arg2[%c76] : memref<81xf32, #tpu.memory_space<smem>>
    %229 = vector.broadcast %228 : f32 to vector<1x256xf32>
    %230 = arith.mulf %229, %219 : vector<1x256xf32>
    %231 = arith.addf %218, %230 : vector<1x256xf32>
    %c255_i32 = arith.constant 255 : i32
    %232 = tpu.dynamic_rotate %4 by %c255_i32 dim 1 : vector<3x256xf32>, i32 -> vector<3x256xf32>
    %c14_i32_15 = arith.constant 14 : i32
    %233 = vector.broadcast %c14_i32_15 : i32 to vector<3x256xi32>
    %234 = arith.cmpi sle, %2, %233 : vector<3x256xi32>
    %cst_16 = arith.constant 0.000000e+00 : f32
    %235 = vector.broadcast %cst_16 : f32 to vector<3x256xf32>
    %236 = arith.select %234, %232, %235 : vector<3x256xi1>, vector<3x256xf32>
    %237 = vector.extract_strided_slice %236 {offsets = [0, 0], sizes = [1, 256], strides = [1, 1]} : vector<3x256xf32> to vector<1x256xf32>
    %c5 = arith.constant 5 : index
    %238 = memref.load %arg2[%c5] : memref<81xf32, #tpu.memory_space<smem>>
    %239 = vector.broadcast %238 : f32 to vector<1x256xf32>
    %240 = arith.mulf %239, %237 : vector<1x256xf32>
    %241 = arith.addf %223, %240 : vector<1x256xf32>
    %c32 = arith.constant 32 : index
    %242 = memref.load %arg2[%c32] : memref<81xf32, #tpu.memory_space<smem>>
    %243 = vector.broadcast %242 : f32 to vector<1x256xf32>
    %244 = arith.mulf %243, %237 : vector<1x256xf32>
    %245 = arith.addf %227, %244 : vector<1x256xf32>
    %c59 = arith.constant 59 : index
    %246 = memref.load %arg2[%c59] : memref<81xf32, #tpu.memory_space<smem>>
    %247 = vector.broadcast %246 : f32 to vector<1x256xf32>
    %248 = arith.mulf %247, %237 : vector<1x256xf32>
    %249 = arith.addf %231, %248 : vector<1x256xf32>
    %250 = vector.extract_strided_slice %236 {offsets = [1, 0], sizes = [1, 256], strides = [1, 1]} : vector<3x256xf32> to vector<1x256xf32>
    %c14 = arith.constant 14 : index
    %251 = memref.load %arg2[%c14] : memref<81xf32, #tpu.memory_space<smem>>
    %252 = vector.broadcast %251 : f32 to vector<1x256xf32>
    %253 = arith.mulf %252, %250 : vector<1x256xf32>
    %254 = arith.addf %241, %253 : vector<1x256xf32>
    %c41 = arith.constant 41 : index
    %255 = memref.load %arg2[%c41] : memref<81xf32, #tpu.memory_space<smem>>
    %256 = vector.broadcast %255 : f32 to vector<1x256xf32>
    %257 = arith.mulf %256, %250 : vector<1x256xf32>
    %258 = arith.addf %245, %257 : vector<1x256xf32>
    %c68 = arith.constant 68 : index
    %259 = memref.load %arg2[%c68] : memref<81xf32, #tpu.memory_space<smem>>
    %260 = vector.broadcast %259 : f32 to vector<1x256xf32>
    %261 = arith.mulf %260, %250 : vector<1x256xf32>
    %262 = arith.addf %249, %261 : vector<1x256xf32>
    %263 = vector.extract_strided_slice %236 {offsets = [2, 0], sizes = [1, 256], strides = [1, 1]} : vector<3x256xf32> to vector<1x256xf32>
    %c23 = arith.constant 23 : index
    %264 = memref.load %arg2[%c23] : memref<81xf32, #tpu.memory_space<smem>>
    %265 = vector.broadcast %264 : f32 to vector<1x256xf32>
    %266 = arith.mulf %265, %263 : vector<1x256xf32>
    %267 = arith.addf %254, %266 : vector<1x256xf32>
    %c50 = arith.constant 50 : index
    %268 = memref.load %arg2[%c50] : memref<81xf32, #tpu.memory_space<smem>>
    %269 = vector.broadcast %268 : f32 to vector<1x256xf32>
    %270 = arith.mulf %269, %263 : vector<1x256xf32>
    %271 = arith.addf %258, %270 : vector<1x256xf32>
    %c77 = arith.constant 77 : index
    %272 = memref.load %arg2[%c77] : memref<81xf32, #tpu.memory_space<smem>>
    %273 = vector.broadcast %272 : f32 to vector<1x256xf32>
    %274 = arith.mulf %273, %263 : vector<1x256xf32>
    %275 = arith.addf %262, %274 : vector<1x256xf32>
    %c241_i32 = arith.constant 241 : i32
    %276 = tpu.dynamic_rotate %4 by %c241_i32 dim 1 : vector<3x256xf32>, i32 -> vector<3x256xf32>
    %c240_i32 = arith.constant 240 : i32
    %277 = vector.broadcast %c240_i32 : i32 to vector<3x256xi32>
    %278 = arith.cmpi slt, %0, %277 : vector<3x256xi32>
    %c1_i32_17 = arith.constant 1 : i32
    %279 = vector.broadcast %c1_i32_17 : i32 to vector<3x256xi32>
    %280 = arith.cmpi sge, %2, %279 : vector<3x256xi32>
    %281 = arith.andi %278, %280 : vector<3x256xi1>
    %cst_18 = arith.constant 0.000000e+00 : f32
    %282 = vector.broadcast %cst_18 : f32 to vector<3x256xf32>
    %283 = arith.select %281, %276, %282 : vector<3x256xi1>, vector<3x256xf32>
    %284 = vector.extract_strided_slice %283 {offsets = [0, 0], sizes = [1, 256], strides = [1, 1]} : vector<3x256xf32> to vector<1x256xf32>
    %c6 = arith.constant 6 : index
    %285 = memref.load %arg2[%c6] : memref<81xf32, #tpu.memory_space<smem>>
    %286 = vector.broadcast %285 : f32 to vector<1x256xf32>
    %287 = arith.mulf %286, %284 : vector<1x256xf32>
    %288 = arith.addf %267, %287 : vector<1x256xf32>
    %c33 = arith.constant 33 : index
    %289 = memref.load %arg2[%c33] : memref<81xf32, #tpu.memory_space<smem>>
    %290 = vector.broadcast %289 : f32 to vector<1x256xf32>
    %291 = arith.mulf %290, %284 : vector<1x256xf32>
    %292 = arith.addf %271, %291 : vector<1x256xf32>
    %c60 = arith.constant 60 : index
    %293 = memref.load %arg2[%c60] : memref<81xf32, #tpu.memory_space<smem>>
    %294 = vector.broadcast %293 : f32 to vector<1x256xf32>
    %295 = arith.mulf %294, %284 : vector<1x256xf32>
    %296 = arith.addf %275, %295 : vector<1x256xf32>
    %297 = vector.extract_strided_slice %283 {offsets = [1, 0], sizes = [1, 256], strides = [1, 1]} : vector<3x256xf32> to vector<1x256xf32>
    %c15 = arith.constant 15 : index
    %298 = memref.load %arg2[%c15] : memref<81xf32, #tpu.memory_space<smem>>
    %299 = vector.broadcast %298 : f32 to vector<1x256xf32>
    %300 = arith.mulf %299, %297 : vector<1x256xf32>
    %301 = arith.addf %288, %300 : vector<1x256xf32>
    %c42 = arith.constant 42 : index
    %302 = memref.load %arg2[%c42] : memref<81xf32, #tpu.memory_space<smem>>
    %303 = vector.broadcast %302 : f32 to vector<1x256xf32>
    %304 = arith.mulf %303, %297 : vector<1x256xf32>
    %305 = arith.addf %292, %304 : vector<1x256xf32>
    %c69 = arith.constant 69 : index
    %306 = memref.load %arg2[%c69] : memref<81xf32, #tpu.memory_space<smem>>
    %307 = vector.broadcast %306 : f32 to vector<1x256xf32>
    %308 = arith.mulf %307, %297 : vector<1x256xf32>
    %309 = arith.addf %296, %308 : vector<1x256xf32>
    %310 = vector.extract_strided_slice %283 {offsets = [2, 0], sizes = [1, 256], strides = [1, 1]} : vector<3x256xf32> to vector<1x256xf32>
    %c24 = arith.constant 24 : index
    %311 = memref.load %arg2[%c24] : memref<81xf32, #tpu.memory_space<smem>>
    %312 = vector.broadcast %311 : f32 to vector<1x256xf32>
    %313 = arith.mulf %312, %310 : vector<1x256xf32>
    %314 = arith.addf %301, %313 : vector<1x256xf32>
    %c51 = arith.constant 51 : index
    %315 = memref.load %arg2[%c51] : memref<81xf32, #tpu.memory_space<smem>>
    %316 = vector.broadcast %315 : f32 to vector<1x256xf32>
    %317 = arith.mulf %316, %310 : vector<1x256xf32>
    %318 = arith.addf %305, %317 : vector<1x256xf32>
    %c78 = arith.constant 78 : index
    %319 = memref.load %arg2[%c78] : memref<81xf32, #tpu.memory_space<smem>>
    %320 = vector.broadcast %319 : f32 to vector<1x256xf32>
    %321 = arith.mulf %320, %310 : vector<1x256xf32>
    %322 = arith.addf %309, %321 : vector<1x256xf32>
    %c240_i32_19 = arith.constant 240 : i32
    %323 = tpu.dynamic_rotate %4 by %c240_i32_19 dim 1 : vector<3x256xf32>, i32 -> vector<3x256xf32>
    %c240_i32_20 = arith.constant 240 : i32
    %324 = vector.broadcast %c240_i32_20 : i32 to vector<3x256xi32>
    %325 = arith.cmpi slt, %0, %324 : vector<3x256xi32>
    %cst_21 = arith.constant 0.000000e+00 : f32
    %326 = vector.broadcast %cst_21 : f32 to vector<3x256xf32>
    %327 = arith.select %325, %323, %326 : vector<3x256xi1>, vector<3x256xf32>
    %328 = vector.extract_strided_slice %327 {offsets = [0, 0], sizes = [1, 256], strides = [1, 1]} : vector<3x256xf32> to vector<1x256xf32>
    %c7 = arith.constant 7 : index
    %329 = memref.load %arg2[%c7] : memref<81xf32, #tpu.memory_space<smem>>
    %330 = vector.broadcast %329 : f32 to vector<1x256xf32>
    %331 = arith.mulf %330, %328 : vector<1x256xf32>
    %332 = arith.addf %314, %331 : vector<1x256xf32>
    %c34 = arith.constant 34 : index
    %333 = memref.load %arg2[%c34] : memref<81xf32, #tpu.memory_space<smem>>
    %334 = vector.broadcast %333 : f32 to vector<1x256xf32>
    %335 = arith.mulf %334, %328 : vector<1x256xf32>
    %336 = arith.addf %318, %335 : vector<1x256xf32>
    %c61 = arith.constant 61 : index
    %337 = memref.load %arg2[%c61] : memref<81xf32, #tpu.memory_space<smem>>
    %338 = vector.broadcast %337 : f32 to vector<1x256xf32>
    %339 = arith.mulf %338, %328 : vector<1x256xf32>
    %340 = arith.addf %322, %339 : vector<1x256xf32>
    %341 = vector.extract_strided_slice %327 {offsets = [1, 0], sizes = [1, 256], strides = [1, 1]} : vector<3x256xf32> to vector<1x256xf32>
    %c16 = arith.constant 16 : index
    %342 = memref.load %arg2[%c16] : memref<81xf32, #tpu.memory_space<smem>>
    %343 = vector.broadcast %342 : f32 to vector<1x256xf32>
    %344 = arith.mulf %343, %341 : vector<1x256xf32>
    %345 = arith.addf %332, %344 : vector<1x256xf32>
    %c43 = arith.constant 43 : index
    %346 = memref.load %arg2[%c43] : memref<81xf32, #tpu.memory_space<smem>>
    %347 = vector.broadcast %346 : f32 to vector<1x256xf32>
    %348 = arith.mulf %347, %341 : vector<1x256xf32>
    %349 = arith.addf %336, %348 : vector<1x256xf32>
    %c70 = arith.constant 70 : index
    %350 = memref.load %arg2[%c70] : memref<81xf32, #tpu.memory_space<smem>>
    %351 = vector.broadcast %350 : f32 to vector<1x256xf32>
    %352 = arith.mulf %351, %341 : vector<1x256xf32>
    %353 = arith.addf %340, %352 : vector<1x256xf32>
    %354 = vector.extract_strided_slice %327 {offsets = [2, 0], sizes = [1, 256], strides = [1, 1]} : vector<3x256xf32> to vector<1x256xf32>
    %c25 = arith.constant 25 : index
    %355 = memref.load %arg2[%c25] : memref<81xf32, #tpu.memory_space<smem>>
    %356 = vector.broadcast %355 : f32 to vector<1x256xf32>
    %357 = arith.mulf %356, %354 : vector<1x256xf32>
    %358 = arith.addf %345, %357 : vector<1x256xf32>
    %c52 = arith.constant 52 : index
    %359 = memref.load %arg2[%c52] : memref<81xf32, #tpu.memory_space<smem>>
    %360 = vector.broadcast %359 : f32 to vector<1x256xf32>
    %361 = arith.mulf %360, %354 : vector<1x256xf32>
    %362 = arith.addf %349, %361 : vector<1x256xf32>
    %c79 = arith.constant 79 : index
    %363 = memref.load %arg2[%c79] : memref<81xf32, #tpu.memory_space<smem>>
    %364 = vector.broadcast %363 : f32 to vector<1x256xf32>
    %365 = arith.mulf %364, %354 : vector<1x256xf32>
    %366 = arith.addf %353, %365 : vector<1x256xf32>
    %c239_i32 = arith.constant 239 : i32
    %367 = tpu.dynamic_rotate %4 by %c239_i32 dim 1 : vector<3x256xf32>, i32 -> vector<3x256xf32>
    %c240_i32_22 = arith.constant 240 : i32
    %368 = vector.broadcast %c240_i32_22 : i32 to vector<3x256xi32>
    %369 = arith.cmpi slt, %0, %368 : vector<3x256xi32>
    %c14_i32_23 = arith.constant 14 : i32
    %370 = vector.broadcast %c14_i32_23 : i32 to vector<3x256xi32>
    %371 = arith.cmpi sle, %2, %370 : vector<3x256xi32>
    %372 = arith.andi %369, %371 : vector<3x256xi1>
    %cst_24 = arith.constant 0.000000e+00 : f32
    %373 = vector.broadcast %cst_24 : f32 to vector<3x256xf32>
    %374 = arith.select %372, %367, %373 : vector<3x256xi1>, vector<3x256xf32>
    %375 = vector.extract_strided_slice %374 {offsets = [0, 0], sizes = [1, 256], strides = [1, 1]} : vector<3x256xf32> to vector<1x256xf32>
    %c8 = arith.constant 8 : index
    %376 = memref.load %arg2[%c8] : memref<81xf32, #tpu.memory_space<smem>>
    %377 = vector.broadcast %376 : f32 to vector<1x256xf32>
    %378 = arith.mulf %377, %375 : vector<1x256xf32>
    %379 = arith.addf %358, %378 : vector<1x256xf32>
    %c35 = arith.constant 35 : index
    %380 = memref.load %arg2[%c35] : memref<81xf32, #tpu.memory_space<smem>>
    %381 = vector.broadcast %380 : f32 to vector<1x256xf32>
    %382 = arith.mulf %381, %375 : vector<1x256xf32>
    %383 = arith.addf %362, %382 : vector<1x256xf32>
    %c62 = arith.constant 62 : index
    %384 = memref.load %arg2[%c62] : memref<81xf32, #tpu.memory_space<smem>>
    %385 = vector.broadcast %384 : f32 to vector<1x256xf32>
    %386 = arith.mulf %385, %375 : vector<1x256xf32>
    %387 = arith.addf %366, %386 : vector<1x256xf32>
    %388 = vector.extract_strided_slice %374 {offsets = [1, 0], sizes = [1, 256], strides = [1, 1]} : vector<3x256xf32> to vector<1x256xf32>
    %c17 = arith.constant 17 : index
    %389 = memref.load %arg2[%c17] : memref<81xf32, #tpu.memory_space<smem>>
    %390 = vector.broadcast %389 : f32 to vector<1x256xf32>
    %391 = arith.mulf %390, %388 : vector<1x256xf32>
    %392 = arith.addf %379, %391 : vector<1x256xf32>
    %c44 = arith.constant 44 : index
    %393 = memref.load %arg2[%c44] : memref<81xf32, #tpu.memory_space<smem>>
    %394 = vector.broadcast %393 : f32 to vector<1x256xf32>
    %395 = arith.mulf %394, %388 : vector<1x256xf32>
    %396 = arith.addf %383, %395 : vector<1x256xf32>
    %c71 = arith.constant 71 : index
    %397 = memref.load %arg2[%c71] : memref<81xf32, #tpu.memory_space<smem>>
    %398 = vector.broadcast %397 : f32 to vector<1x256xf32>
    %399 = arith.mulf %398, %388 : vector<1x256xf32>
    %400 = arith.addf %387, %399 : vector<1x256xf32>
    %401 = vector.extract_strided_slice %374 {offsets = [2, 0], sizes = [1, 256], strides = [1, 1]} : vector<3x256xf32> to vector<1x256xf32>
    %c26 = arith.constant 26 : index
    %402 = memref.load %arg2[%c26] : memref<81xf32, #tpu.memory_space<smem>>
    %403 = vector.broadcast %402 : f32 to vector<1x256xf32>
    %404 = arith.mulf %403, %401 : vector<1x256xf32>
    %405 = arith.addf %392, %404 : vector<1x256xf32>
    %c53 = arith.constant 53 : index
    %406 = memref.load %arg2[%c53] : memref<81xf32, #tpu.memory_space<smem>>
    %407 = vector.broadcast %406 : f32 to vector<1x256xf32>
    %408 = arith.mulf %407, %401 : vector<1x256xf32>
    %409 = arith.addf %396, %408 : vector<1x256xf32>
    %c80 = arith.constant 80 : index
    %410 = memref.load %arg2[%c80] : memref<81xf32, #tpu.memory_space<smem>>
    %411 = vector.broadcast %410 : f32 to vector<1x256xf32>
    %412 = arith.mulf %411, %401 : vector<1x256xf32>
    %413 = arith.addf %400, %412 : vector<1x256xf32>
    %c0_25 = arith.constant 0 : index
    %c0_26 = arith.constant 0 : index
    %c0_27 = arith.constant 0 : index
    %414 = vector.load %arg4[%c0_25, %c0_26, %c0_27] : memref<2x3x256xf32, #tpu.memory_space<vmem>>, vector<1x1x256xf32>
    %415 = vector.shape_cast %414 : vector<1x1x256xf32> to vector<1x256xf32>
    %416 = vector.shape_cast %405 : vector<1x256xf32> to vector<1x1x256xf32>
    tpu.vector_store %arg4[%c0_25, %c0_26, %c0_27], %416 {strides = array<i32>} : memref<2x3x256xf32, #tpu.memory_space<vmem>>, vector<1x1x256xf32>,
    %c0_28 = arith.constant 0 : index
    %c1_29 = arith.constant 1 : index
    %c0_30 = arith.constant 0 : index
    %417 = vector.load %arg4[%c0_28, %c1_29, %c0_30] : memref<2x3x256xf32, #tpu.memory_space<vmem>>, vector<1x1x256xf32>
    %418 = vector.shape_cast %417 : vector<1x1x256xf32> to vector<1x256xf32>
    %419 = vector.shape_cast %409 : vector<1x256xf32> to vector<1x1x256xf32>
    tpu.vector_store %arg4[%c0_28, %c1_29, %c0_30], %419 {strides = array<i32>} : memref<2x3x256xf32, #tpu.memory_space<vmem>>, vector<1x1x256xf32>,
    %c0_31 = arith.constant 0 : index
    %c2_32 = arith.constant 2 : index
    %c0_33 = arith.constant 0 : index
    %420 = vector.load %arg4[%c0_31, %c2_32, %c0_33] : memref<2x3x256xf32, #tpu.memory_space<vmem>>, vector<1x1x256xf32>
    %421 = vector.shape_cast %420 : vector<1x1x256xf32> to vector<1x256xf32>
    %422 = vector.shape_cast %413 : vector<1x256xf32> to vector<1x1x256xf32>
    tpu.vector_store %arg4[%c0_31, %c2_32, %c0_33], %422 {strides = array<i32>} : memref<2x3x256xf32, #tpu.memory_space<vmem>>, vector<1x1x256xf32>,
    %c1_34 = arith.constant 1 : index
    %c0_35 = arith.constant 0 : index
    %c0_36 = arith.constant 0 : index
    %423 = vector.load %arg1[%c1_34, %c0_35, %c0_36] : memref<2x3x256xf32, #tpu.memory_space<vmem>>, vector<1x3x256xf32>
    %424 = vector.shape_cast %423 : vector<1x3x256xf32> to vector<3x256xf32>
    %c17_i32_37 = arith.constant 17 : i32
    %425 = tpu.dynamic_rotate %424 by %c17_i32_37 dim 1 : vector<3x256xf32>, i32 -> vector<3x256xf32>
    %c16_i32_38 = arith.constant 16 : i32
    %426 = vector.broadcast %c16_i32_38 : i32 to vector<3x256xi32>
    %427 = arith.cmpi sge, %0, %426 : vector<3x256xi32>
    %c1_i32_39 = arith.constant 1 : i32
    %428 = vector.broadcast %c1_i32_39 : i32 to vector<3x256xi32>
    %429 = arith.cmpi sge, %2, %428 : vector<3x256xi32>
    %430 = arith.andi %427, %429 : vector<3x256xi1>
    %cst_40 = arith.constant 0.000000e+00 : f32
    %431 = vector.broadcast %cst_40 : f32 to vector<3x256xf32>
    %432 = arith.select %430, %425, %431 : vector<3x256xi1>, vector<3x256xf32>
    %433 = vector.extract_strided_slice %432 {offsets = [0, 0], sizes = [1, 256], strides = [1, 1]} : vector<3x256xf32> to vector<1x256xf32>
    %c0_41 = arith.constant 0 : index
    %434 = memref.load %arg2[%c0_41] : memref<81xf32, #tpu.memory_space<smem>>
    %435 = vector.broadcast %434 : f32 to vector<1x256xf32>
    %436 = arith.mulf %435, %433 : vector<1x256xf32>
    %c0_42 = arith.constant 0 : index
    %437 = memref.load %arg3[%c0_42] : memref<3xf32, #tpu.memory_space<smem>>
    %438 = vector.broadcast %437 : f32 to vector<1x256xf32>
    %439 = arith.addf %436, %438 : vector<1x256xf32>
    %c27_43 = arith.constant 27 : index
    %440 = memref.load %arg2[%c27_43] : memref<81xf32, #tpu.memory_space<smem>>
    %441 = vector.broadcast %440 : f32 to vector<1x256xf32>
    %442 = arith.mulf %441, %433 : vector<1x256xf32>
    %c1_44 = arith.constant 1 : index
    %443 = memref.load %arg3[%c1_44] : memref<3xf32, #tpu.memory_space<smem>>
    %444 = vector.broadcast %443 : f32 to vector<1x256xf32>
    %445 = arith.addf %442, %444 : vector<1x256xf32>
    %c54_45 = arith.constant 54 : index
    %446 = memref.load %arg2[%c54_45] : memref<81xf32, #tpu.memory_space<smem>>
    %447 = vector.broadcast %446 : f32 to vector<1x256xf32>
    %448 = arith.mulf %447, %433 : vector<1x256xf32>
    %c2_46 = arith.constant 2 : index
    %449 = memref.load %arg3[%c2_46] : memref<3xf32, #tpu.memory_space<smem>>
    %450 = vector.broadcast %449 : f32 to vector<1x256xf32>
    %451 = arith.addf %448, %450 : vector<1x256xf32>
    %452 = vector.extract_strided_slice %432 {offsets = [1, 0], sizes = [1, 256], strides = [1, 1]} : vector<3x256xf32> to vector<1x256xf32>
    %c9_47 = arith.constant 9 : index
    %453 = memref.load %arg2[%c9_47] : memref<81xf32, #tpu.memory_space<smem>>
    %454 = vector.broadcast %453 : f32 to vector<1x256xf32>
    %455 = arith.mulf %454, %452 : vector<1x256xf32>
    %456 = arith.addf %439, %455 : vector<1x256xf32>
    %c36_48 = arith.constant 36 : index
    %457 = memref.load %arg2[%c36_48] : memref<81xf32, #tpu.memory_space<smem>>
    %458 = vector.broadcast %457 : f32 to vector<1x256xf32>
    %459 = arith.mulf %458, %452 : vector<1x256xf32>
    %460 = arith.addf %445, %459 : vector<1x256xf32>
    %c63_49 = arith.constant 63 : index
    %461 = memref.load %arg2[%c63_49] : memref<81xf32, #tpu.memory_space<smem>>
    %462 = vector.broadcast %461 : f32 to vector<1x256xf32>
    %463 = arith.mulf %462, %452 : vector<1x256xf32>
    %464 = arith.addf %451, %463 : vector<1x256xf32>
    %465 = vector.extract_strided_slice %432 {offsets = [2, 0], sizes = [1, 256], strides = [1, 1]} : vector<3x256xf32> to vector<1x256xf32>
    %c18_50 = arith.constant 18 : index
    %466 = memref.load %arg2[%c18_50] : memref<81xf32, #tpu.memory_space<smem>>
    %467 = vector.broadcast %466 : f32 to vector<1x256xf32>
    %468 = arith.mulf %467, %465 : vector<1x256xf32>
    %469 = arith.addf %456, %468 : vector<1x256xf32>
    %c45_51 = arith.constant 45 : index
    %470 = memref.load %arg2[%c45_51] : memref<81xf32, #tpu.memory_space<smem>>
    %471 = vector.broadcast %470 : f32 to vector<1x256xf32>
    %472 = arith.mulf %471, %465 : vector<1x256xf32>
    %473 = arith.addf %460, %472 : vector<1x256xf32>
    %c72_52 = arith.constant 72 : index
    %474 = memref.load %arg2[%c72_52] : memref<81xf32, #tpu.memory_space<smem>>
    %475 = vector.broadcast %474 : f32 to vector<1x256xf32>
    %476 = arith.mulf %475, %465 : vector<1x256xf32>
    %477 = arith.addf %464, %476 : vector<1x256xf32>
    %c16_i32_53 = arith.constant 16 : i32
    %478 = tpu.dynamic_rotate %424 by %c16_i32_53 dim 1 : vector<3x256xf32>, i32 -> vector<3x256xf32>
    %c16_i32_54 = arith.constant 16 : i32
    %479 = vector.broadcast %c16_i32_54 : i32 to vector<3x256xi32>
    %480 = arith.cmpi sge, %0, %479 : vector<3x256xi32>
    %cst_55 = arith.constant 0.000000e+00 : f32
    %481 = vector.broadcast %cst_55 : f32 to vector<3x256xf32>
    %482 = arith.select %480, %478, %481 : vector<3x256xi1>, vector<3x256xf32>
    %483 = vector.extract_strided_slice %482 {offsets = [0, 0], sizes = [1, 256], strides = [1, 1]} : vector<3x256xf32> to vector<1x256xf32>
    %c1_56 = arith.constant 1 : index
    %484 = memref.load %arg2[%c1_56] : memref<81xf32, #tpu.memory_space<smem>>
    %485 = vector.broadcast %484 : f32 to vector<1x256xf32>
    %486 = arith.mulf %485, %483 : vector<1x256xf32>
    %487 = arith.addf %469, %486 : vector<1x256xf32>
    %c28_57 = arith.constant 28 : index
    %488 = memref.load %arg2[%c28_57] : memref<81xf32, #tpu.memory_space<smem>>
    %489 = vector.broadcast %488 : f32 to vector<1x256xf32>
    %490 = arith.mulf %489, %483 : vector<1x256xf32>
    %491 = arith.addf %473, %490 : vector<1x256xf32>
    %c55_58 = arith.constant 55 : index
    %492 = memref.load %arg2[%c55_58] : memref<81xf32, #tpu.memory_space<smem>>
    %493 = vector.broadcast %492 : f32 to vector<1x256xf32>
    %494 = arith.mulf %493, %483 : vector<1x256xf32>
    %495 = arith.addf %477, %494 : vector<1x256xf32>
    %496 = vector.extract_strided_slice %482 {offsets = [1, 0], sizes = [1, 256], strides = [1, 1]} : vector<3x256xf32> to vector<1x256xf32>
    %c10_59 = arith.constant 10 : index
    %497 = memref.load %arg2[%c10_59] : memref<81xf32, #tpu.memory_space<smem>>
    %498 = vector.broadcast %497 : f32 to vector<1x256xf32>
    %499 = arith.mulf %498, %496 : vector<1x256xf32>
    %500 = arith.addf %487, %499 : vector<1x256xf32>
    %c37_60 = arith.constant 37 : index
    %501 = memref.load %arg2[%c37_60] : memref<81xf32, #tpu.memory_space<smem>>
    %502 = vector.broadcast %501 : f32 to vector<1x256xf32>
    %503 = arith.mulf %502, %496 : vector<1x256xf32>
    %504 = arith.addf %491, %503 : vector<1x256xf32>
    %c64_61 = arith.constant 64 : index
    %505 = memref.load %arg2[%c64_61] : memref<81xf32, #tpu.memory_space<smem>>
    %506 = vector.broadcast %505 : f32 to vector<1x256xf32>
    %507 = arith.mulf %506, %496 : vector<1x256xf32>
    %508 = arith.addf %495, %507 : vector<1x256xf32>
    %509 = vector.extract_strided_slice %482 {offsets = [2, 0], sizes = [1, 256], strides = [1, 1]} : vector<3x256xf32> to vector<1x256xf32>
    %c19_62 = arith.constant 19 : index
    %510 = memref.load %arg2[%c19_62] : memref<81xf32, #tpu.memory_space<smem>>
    %511 = vector.broadcast %510 : f32 to vector<1x256xf32>
    %512 = arith.mulf %511, %509 : vector<1x256xf32>
    %513 = arith.addf %500, %512 : vector<1x256xf32>
    %c46_63 = arith.constant 46 : index
    %514 = memref.load %arg2[%c46_63] : memref<81xf32, #tpu.memory_space<smem>>
    %515 = vector.broadcast %514 : f32 to vector<1x256xf32>
    %516 = arith.mulf %515, %509 : vector<1x256xf32>
    %517 = arith.addf %504, %516 : vector<1x256xf32>
    %c73_64 = arith.constant 73 : index
    %518 = memref.load %arg2[%c73_64] : memref<81xf32, #tpu.memory_space<smem>>
    %519 = vector.broadcast %518 : f32 to vector<1x256xf32>
    %520 = arith.mulf %519, %509 : vector<1x256xf32>
    %521 = arith.addf %508, %520 : vector<1x256xf32>
    %c15_i32_65 = arith.constant 15 : i32
    %522 = tpu.dynamic_rotate %424 by %c15_i32_65 dim 1 : vector<3x256xf32>, i32 -> vector<3x256xf32>
    %c16_i32_66 = arith.constant 16 : i32
    %523 = vector.broadcast %c16_i32_66 : i32 to vector<3x256xi32>
    %524 = arith.cmpi sge, %0, %523 : vector<3x256xi32>
    %c14_i32_67 = arith.constant 14 : i32
    %525 = vector.broadcast %c14_i32_67 : i32 to vector<3x256xi32>
    %526 = arith.cmpi sle, %2, %525 : vector<3x256xi32>
    %527 = arith.andi %524, %526 : vector<3x256xi1>
    %cst_68 = arith.constant 0.000000e+00 : f32
    %528 = vector.broadcast %cst_68 : f32 to vector<3x256xf32>
    %529 = arith.select %527, %522, %528 : vector<3x256xi1>, vector<3x256xf32>
    %530 = vector.extract_strided_slice %529 {offsets = [0, 0], sizes = [1, 256], strides = [1, 1]} : vector<3x256xf32> to vector<1x256xf32>
    %c2_69 = arith.constant 2 : index
    %531 = memref.load %arg2[%c2_69] : memref<81xf32, #tpu.memory_space<smem>>
    %532 = vector.broadcast %531 : f32 to vector<1x256xf32>
    %533 = arith.mulf %532, %530 : vector<1x256xf32>
    %534 = arith.addf %513, %533 : vector<1x256xf32>
    %c29_70 = arith.constant 29 : index
    %535 = memref.load %arg2[%c29_70] : memref<81xf32, #tpu.memory_space<smem>>
    %536 = vector.broadcast %535 : f32 to vector<1x256xf32>
    %537 = arith.mulf %536, %530 : vector<1x256xf32>
    %538 = arith.addf %517, %537 : vector<1x256xf32>
    %c56_71 = arith.constant 56 : index
    %539 = memref.load %arg2[%c56_71] : memref<81xf32, #tpu.memory_space<smem>>
    %540 = vector.broadcast %539 : f32 to vector<1x256xf32>
    %541 = arith.mulf %540, %530 : vector<1x256xf32>
    %542 = arith.addf %521, %541 : vector<1x256xf32>
    %543 = vector.extract_strided_slice %529 {offsets = [1, 0], sizes = [1, 256], strides = [1, 1]} : vector<3x256xf32> to vector<1x256xf32>
    %c11_72 = arith.constant 11 : index
    %544 = memref.load %arg2[%c11_72] : memref<81xf32, #tpu.memory_space<smem>>
    %545 = vector.broadcast %544 : f32 to vector<1x256xf32>
    %546 = arith.mulf %545, %543 : vector<1x256xf32>
    %547 = arith.addf %534, %546 : vector<1x256xf32>
    %c38_73 = arith.constant 38 : index
    %548 = memref.load %arg2[%c38_73] : memref<81xf32, #tpu.memory_space<smem>>
    %549 = vector.broadcast %548 : f32 to vector<1x256xf32>
    %550 = arith.mulf %549, %543 : vector<1x256xf32>
    %551 = arith.addf %538, %550 : vector<1x256xf32>
    %c65_74 = arith.constant 65 : index
    %552 = memref.load %arg2[%c65_74] : memref<81xf32, #tpu.memory_space<smem>>
    %553 = vector.broadcast %552 : f32 to vector<1x256xf32>
    %554 = arith.mulf %553, %543 : vector<1x256xf32>
    %555 = arith.addf %542, %554 : vector<1x256xf32>
    %556 = vector.extract_strided_slice %529 {offsets = [2, 0], sizes = [1, 256], strides = [1, 1]} : vector<3x256xf32> to vector<1x256xf32>
    %c20_75 = arith.constant 20 : index
    %557 = memref.load %arg2[%c20_75] : memref<81xf32, #tpu.memory_space<smem>>
    %558 = vector.broadcast %557 : f32 to vector<1x256xf32>
    %559 = arith.mulf %558, %556 : vector<1x256xf32>
    %560 = arith.addf %547, %559 : vector<1x256xf32>
    %c47_76 = arith.constant 47 : index
    %561 = memref.load %arg2[%c47_76] : memref<81xf32, #tpu.memory_space<smem>>
    %562 = vector.broadcast %561 : f32 to vector<1x256xf32>
    %563 = arith.mulf %562, %556 : vector<1x256xf32>
    %564 = arith.addf %551, %563 : vector<1x256xf32>
    %c74_77 = arith.constant 74 : index
    %565 = memref.load %arg2[%c74_77] : memref<81xf32, #tpu.memory_space<smem>>
    %566 = vector.broadcast %565 : f32 to vector<1x256xf32>
    %567 = arith.mulf %566, %556 : vector<1x256xf32>
    %568 = arith.addf %555, %567 : vector<1x256xf32>
    %c1_i32_78 = arith.constant 1 : i32
    %569 = tpu.dynamic_rotate %424 by %c1_i32_78 dim 1 : vector<3x256xf32>, i32 -> vector<3x256xf32>
    %c1_i32_79 = arith.constant 1 : i32
    %570 = vector.broadcast %c1_i32_79 : i32 to vector<3x256xi32>
    %571 = arith.cmpi sge, %2, %570 : vector<3x256xi32>
    %cst_80 = arith.constant 0.000000e+00 : f32
    %572 = vector.broadcast %cst_80 : f32 to vector<3x256xf32>
    %573 = arith.select %571, %569, %572 : vector<3x256xi1>, vector<3x256xf32>
    %574 = vector.extract_strided_slice %573 {offsets = [0, 0], sizes = [1, 256], strides = [1, 1]} : vector<3x256xf32> to vector<1x256xf32>
    %c3_81 = arith.constant 3 : index
    %575 = memref.load %arg2[%c3_81] : memref<81xf32, #tpu.memory_space<smem>>
    %576 = vector.broadcast %575 : f32 to vector<1x256xf32>
    %577 = arith.mulf %576, %574 : vector<1x256xf32>
    %578 = arith.addf %560, %577 : vector<1x256xf32>
    %c30_82 = arith.constant 30 : index
    %579 = memref.load %arg2[%c30_82] : memref<81xf32, #tpu.memory_space<smem>>
    %580 = vector.broadcast %579 : f32 to vector<1x256xf32>
    %581 = arith.mulf %580, %574 : vector<1x256xf32>
    %582 = arith.addf %564, %581 : vector<1x256xf32>
    %c57_83 = arith.constant 57 : index
    %583 = memref.load %arg2[%c57_83] : memref<81xf32, #tpu.memory_space<smem>>
    %584 = vector.broadcast %583 : f32 to vector<1x256xf32>
    %585 = arith.mulf %584, %574 : vector<1x256xf32>
    %586 = arith.addf %568, %585 : vector<1x256xf32>
    %587 = vector.extract_strided_slice %573 {offsets = [1, 0], sizes = [1, 256], strides = [1, 1]} : vector<3x256xf32> to vector<1x256xf32>
    %c12_84 = arith.constant 12 : index
    %588 = memref.load %arg2[%c12_84] : memref<81xf32, #tpu.memory_space<smem>>
    %589 = vector.broadcast %588 : f32 to vector<1x256xf32>
    %590 = arith.mulf %589, %587 : vector<1x256xf32>
    %591 = arith.addf %578, %590 : vector<1x256xf32>
    %c39_85 = arith.constant 39 : index
    %592 = memref.load %arg2[%c39_85] : memref<81xf32, #tpu.memory_space<smem>>
    %593 = vector.broadcast %592 : f32 to vector<1x256xf32>
    %594 = arith.mulf %593, %587 : vector<1x256xf32>
    %595 = arith.addf %582, %594 : vector<1x256xf32>
    %c66_86 = arith.constant 66 : index
    %596 = memref.load %arg2[%c66_86] : memref<81xf32, #tpu.memory_space<smem>>
    %597 = vector.broadcast %596 : f32 to vector<1x256xf32>
    %598 = arith.mulf %597, %587 : vector<1x256xf32>
    %599 = arith.addf %586, %598 : vector<1x256xf32>
    %600 = vector.extract_strided_slice %573 {offsets = [2, 0], sizes = [1, 256], strides = [1, 1]} : vector<3x256xf32> to vector<1x256xf32>
    %c21_87 = arith.constant 21 : index
    %601 = memref.load %arg2[%c21_87] : memref<81xf32, #tpu.memory_space<smem>>
    %602 = vector.broadcast %601 : f32 to vector<1x256xf32>
    %603 = arith.mulf %602, %600 : vector<1x256xf32>
    %604 = arith.addf %591, %603 : vector<1x256xf32>
    %c48_88 = arith.constant 48 : index
    %605 = memref.load %arg2[%c48_88] : memref<81xf32, #tpu.memory_space<smem>>
    %606 = vector.broadcast %605 : f32 to vector<1x256xf32>
    %607 = arith.mulf %606, %600 : vector<1x256xf32>
    %608 = arith.addf %595, %607 : vector<1x256xf32>
    %c75_89 = arith.constant 75 : index
    %609 = memref.load %arg2[%c75_89] : memref<81xf32, #tpu.memory_space<smem>>
    %610 = vector.broadcast %609 : f32 to vector<1x256xf32>
    %611 = arith.mulf %610, %600 : vector<1x256xf32>
    %612 = arith.addf %599, %611 : vector<1x256xf32>
    %613 = vector.extract_strided_slice %424 {offsets = [0, 0], sizes = [1, 256], strides = [1, 1]} : vector<3x256xf32> to vector<1x256xf32>
    %c4_90 = arith.constant 4 : index
    %614 = memref.load %arg2[%c4_90] : memref<81xf32, #tpu.memory_space<smem>>
    %615 = vector.broadcast %614 : f32 to vector<1x256xf32>
    %616 = arith.mulf %615, %613 : vector<1x256xf32>
    %617 = arith.addf %604, %616 : vector<1x256xf32>
    %c31_91 = arith.constant 31 : index
    %618 = memref.load %arg2[%c31_91] : memref<81xf32, #tpu.memory_space<smem>>
    %619 = vector.broadcast %618 : f32 to vector<1x256xf32>
    %620 = arith.mulf %619, %613 : vector<1x256xf32>
    %621 = arith.addf %608, %620 : vector<1x256xf32>
    %c58_92 = arith.constant 58 : index
    %622 = memref.load %arg2[%c58_92] : memref<81xf32, #tpu.memory_space<smem>>
    %623 = vector.broadcast %622 : f32 to vector<1x256xf32>
    %624 = arith.mulf %623, %613 : vector<1x256xf32>
    %625 = arith.addf %612, %624 : vector<1x256xf32>
    %626 = vector.extract_strided_slice %424 {offsets = [1, 0], sizes = [1, 256], strides = [1, 1]} : vector<3x256xf32> to vector<1x256xf32>
    %c13_93 = arith.constant 13 : index
    %627 = memref.load %arg2[%c13_93] : memref<81xf32, #tpu.memory_space<smem>>
    %628 = vector.broadcast %627 : f32 to vector<1x256xf32>
    %629 = arith.mulf %628, %626 : vector<1x256xf32>
    %630 = arith.addf %617, %629 : vector<1x256xf32>
    %c40_94 = arith.constant 40 : index
    %631 = memref.load %arg2[%c40_94] : memref<81xf32, #tpu.memory_space<smem>>
    %632 = vector.broadcast %631 : f32 to vector<1x256xf32>
    %633 = arith.mulf %632, %626 : vector<1x256xf32>
    %634 = arith.addf %621, %633 : vector<1x256xf32>
    %c67_95 = arith.constant 67 : index
    %635 = memref.load %arg2[%c67_95] : memref<81xf32, #tpu.memory_space<smem>>
    %636 = vector.broadcast %635 : f32 to vector<1x256xf32>
    %637 = arith.mulf %636, %626 : vector<1x256xf32>
    %638 = arith.addf %625, %637 : vector<1x256xf32>
    %639 = vector.extract_strided_slice %424 {offsets = [2, 0], sizes = [1, 256], strides = [1, 1]} : vector<3x256xf32> to vector<1x256xf32>
    %c22_96 = arith.constant 22 : index
    %640 = memref.load %arg2[%c22_96] : memref<81xf32, #tpu.memory_space<smem>>
    %641 = vector.broadcast %640 : f32 to vector<1x256xf32>
    %642 = arith.mulf %641, %639 : vector<1x256xf32>
    %643 = arith.addf %630, %642 : vector<1x256xf32>
    %c49_97 = arith.constant 49 : index
    %644 = memref.load %arg2[%c49_97] : memref<81xf32, #tpu.memory_space<smem>>
    %645 = vector.broadcast %644 : f32 to vector<1x256xf32>
    %646 = arith.mulf %645, %639 : vector<1x256xf32>
    %647 = arith.addf %634, %646 : vector<1x256xf32>
    %c76_98 = arith.constant 76 : index
    %648 = memref.load %arg2[%c76_98] : memref<81xf32, #tpu.memory_space<smem>>
    %649 = vector.broadcast %648 : f32 to vector<1x256xf32>
    %650 = arith.mulf %649, %639 : vector<1x256xf32>
    %651 = arith.addf %638, %650 : vector<1x256xf32>
    %c255_i32_99 = arith.constant 255 : i32
    %652 = tpu.dynamic_rotate %424 by %c255_i32_99 dim 1 : vector<3x256xf32>, i32 -> vector<3x256xf32>
    %c14_i32_100 = arith.constant 14 : i32
    %653 = vector.broadcast %c14_i32_100 : i32 to vector<3x256xi32>
    %654 = arith.cmpi sle, %2, %653 : vector<3x256xi32>
    %cst_101 = arith.constant 0.000000e+00 : f32
    %655 = vector.broadcast %cst_101 : f32 to vector<3x256xf32>
    %656 = arith.select %654, %652, %655 : vector<3x256xi1>, vector<3x256xf32>
    %657 = vector.extract_strided_slice %656 {offsets = [0, 0], sizes = [1, 256], strides = [1, 1]} : vector<3x256xf32> to vector<1x256xf32>
    %c5_102 = arith.constant 5 : index
    %658 = memref.load %arg2[%c5_102] : memref<81xf32, #tpu.memory_space<smem>>
    %659 = vector.broadcast %658 : f32 to vector<1x256xf32>
    %660 = arith.mulf %659, %657 : vector<1x256xf32>
    %661 = arith.addf %643, %660 : vector<1x256xf32>
    %c32_103 = arith.constant 32 : index
    %662 = memref.load %arg2[%c32_103] : memref<81xf32, #tpu.memory_space<smem>>
    %663 = vector.broadcast %662 : f32 to vector<1x256xf32>
    %664 = arith.mulf %663, %657 : vector<1x256xf32>
    %665 = arith.addf %647, %664 : vector<1x256xf32>
    %c59_104 = arith.constant 59 : index
    %666 = memref.load %arg2[%c59_104] : memref<81xf32, #tpu.memory_space<smem>>
    %667 = vector.broadcast %666 : f32 to vector<1x256xf32>
    %668 = arith.mulf %667, %657 : vector<1x256xf32>
    %669 = arith.addf %651, %668 : vector<1x256xf32>
    %670 = vector.extract_strided_slice %656 {offsets = [1, 0], sizes = [1, 256], strides = [1, 1]} : vector<3x256xf32> to vector<1x256xf32>
    %c14_105 = arith.constant 14 : index
    %671 = memref.load %arg2[%c14_105] : memref<81xf32, #tpu.memory_space<smem>>
    %672 = vector.broadcast %671 : f32 to vector<1x256xf32>
    %673 = arith.mulf %672, %670 : vector<1x256xf32>
    %674 = arith.addf %661, %673 : vector<1x256xf32>
    %c41_106 = arith.constant 41 : index
    %675 = memref.load %arg2[%c41_106] : memref<81xf32, #tpu.memory_space<smem>>
    %676 = vector.broadcast %675 : f32 to vector<1x256xf32>
    %677 = arith.mulf %676, %670 : vector<1x256xf32>
    %678 = arith.addf %665, %677 : vector<1x256xf32>
    %c68_107 = arith.constant 68 : index
    %679 = memref.load %arg2[%c68_107] : memref<81xf32, #tpu.memory_space<smem>>
    %680 = vector.broadcast %679 : f32 to vector<1x256xf32>
    %681 = arith.mulf %680, %670 : vector<1x256xf32>
    %682 = arith.addf %669, %681 : vector<1x256xf32>
    %683 = vector.extract_strided_slice %656 {offsets = [2, 0], sizes = [1, 256], strides = [1, 1]} : vector<3x256xf32> to vector<1x256xf32>
    %c23_108 = arith.constant 23 : index
    %684 = memref.load %arg2[%c23_108] : memref<81xf32, #tpu.memory_space<smem>>
    %685 = vector.broadcast %684 : f32 to vector<1x256xf32>
    %686 = arith.mulf %685, %683 : vector<1x256xf32>
    %687 = arith.addf %674, %686 : vector<1x256xf32>
    %c50_109 = arith.constant 50 : index
    %688 = memref.load %arg2[%c50_109] : memref<81xf32, #tpu.memory_space<smem>>
    %689 = vector.broadcast %688 : f32 to vector<1x256xf32>
    %690 = arith.mulf %689, %683 : vector<1x256xf32>
    %691 = arith.addf %678, %690 : vector<1x256xf32>
    %c77_110 = arith.constant 77 : index
    %692 = memref.load %arg2[%c77_110] : memref<81xf32, #tpu.memory_space<smem>>
    %693 = vector.broadcast %692 : f32 to vector<1x256xf32>
    %694 = arith.mulf %693, %683 : vector<1x256xf32>
    %695 = arith.addf %682, %694 : vector<1x256xf32>
    %c241_i32_111 = arith.constant 241 : i32
    %696 = tpu.dynamic_rotate %424 by %c241_i32_111 dim 1 : vector<3x256xf32>, i32 -> vector<3x256xf32>
    %c240_i32_112 = arith.constant 240 : i32
    %697 = vector.broadcast %c240_i32_112 : i32 to vector<3x256xi32>
    %698 = arith.cmpi slt, %0, %697 : vector<3x256xi32>
    %c1_i32_113 = arith.constant 1 : i32
    %699 = vector.broadcast %c1_i32_113 : i32 to vector<3x256xi32>
    %700 = arith.cmpi sge, %2, %699 : vector<3x256xi32>
    %701 = arith.andi %698, %700 : vector<3x256xi1>
    %cst_114 = arith.constant 0.000000e+00 : f32
    %702 = vector.broadcast %cst_114 : f32 to vector<3x256xf32>
    %703 = arith.select %701, %696, %702 : vector<3x256xi1>, vector<3x256xf32>
    %704 = vector.extract_strided_slice %703 {offsets = [0, 0], sizes = [1, 256], strides = [1, 1]} : vector<3x256xf32> to vector<1x256xf32>
    %c6_115 = arith.constant 6 : index
    %705 = memref.load %arg2[%c6_115] : memref<81xf32, #tpu.memory_space<smem>>
    %706 = vector.broadcast %705 : f32 to vector<1x256xf32>
    %707 = arith.mulf %706, %704 : vector<1x256xf32>
    %708 = arith.addf %687, %707 : vector<1x256xf32>
    %c33_116 = arith.constant 33 : index
    %709 = memref.load %arg2[%c33_116] : memref<81xf32, #tpu.memory_space<smem>>
    %710 = vector.broadcast %709 : f32 to vector<1x256xf32>
    %711 = arith.mulf %710, %704 : vector<1x256xf32>
    %712 = arith.addf %691, %711 : vector<1x256xf32>
    %c60_117 = arith.constant 60 : index
    %713 = memref.load %arg2[%c60_117] : memref<81xf32, #tpu.memory_space<smem>>
    %714 = vector.broadcast %713 : f32 to vector<1x256xf32>
    %715 = arith.mulf %714, %704 : vector<1x256xf32>
    %716 = arith.addf %695, %715 : vector<1x256xf32>
    %717 = vector.extract_strided_slice %703 {offsets = [1, 0], sizes = [1, 256], strides = [1, 1]} : vector<3x256xf32> to vector<1x256xf32>
    %c15_118 = arith.constant 15 : index
    %718 = memref.load %arg2[%c15_118] : memref<81xf32, #tpu.memory_space<smem>>
    %719 = vector.broadcast %718 : f32 to vector<1x256xf32>
    %720 = arith.mulf %719, %717 : vector<1x256xf32>
    %721 = arith.addf %708, %720 : vector<1x256xf32>
    %c42_119 = arith.constant 42 : index
    %722 = memref.load %arg2[%c42_119] : memref<81xf32, #tpu.memory_space<smem>>
    %723 = vector.broadcast %722 : f32 to vector<1x256xf32>
    %724 = arith.mulf %723, %717 : vector<1x256xf32>
    %725 = arith.addf %712, %724 : vector<1x256xf32>
    %c69_120 = arith.constant 69 : index
    %726 = memref.load %arg2[%c69_120] : memref<81xf32, #tpu.memory_space<smem>>
    %727 = vector.broadcast %726 : f32 to vector<1x256xf32>
    %728 = arith.mulf %727, %717 : vector<1x256xf32>
    %729 = arith.addf %716, %728 : vector<1x256xf32>
    %730 = vector.extract_strided_slice %703 {offsets = [2, 0], sizes = [1, 256], strides = [1, 1]} : vector<3x256xf32> to vector<1x256xf32>
    %c24_121 = arith.constant 24 : index
    %731 = memref.load %arg2[%c24_121] : memref<81xf32, #tpu.memory_space<smem>>
    %732 = vector.broadcast %731 : f32 to vector<1x256xf32>
    %733 = arith.mulf %732, %730 : vector<1x256xf32>
    %734 = arith.addf %721, %733 : vector<1x256xf32>
    %c51_122 = arith.constant 51 : index
    %735 = memref.load %arg2[%c51_122] : memref<81xf32, #tpu.memory_space<smem>>
    %736 = vector.broadcast %735 : f32 to vector<1x256xf32>
    %737 = arith.mulf %736, %730 : vector<1x256xf32>
    %738 = arith.addf %725, %737 : vector<1x256xf32>
    %c78_123 = arith.constant 78 : index
    %739 = memref.load %arg2[%c78_123] : memref<81xf32, #tpu.memory_space<smem>>
    %740 = vector.broadcast %739 : f32 to vector<1x256xf32>
    %741 = arith.mulf %740, %730 : vector<1x256xf32>
    %742 = arith.addf %729, %741 : vector<1x256xf32>
    %c240_i32_124 = arith.constant 240 : i32
    %743 = tpu.dynamic_rotate %424 by %c240_i32_124 dim 1 : vector<3x256xf32>, i32 -> vector<3x256xf32>
    %c240_i32_125 = arith.constant 240 : i32
    %744 = vector.broadcast %c240_i32_125 : i32 to vector<3x256xi32>
    %745 = arith.cmpi slt, %0, %744 : vector<3x256xi32>
    %cst_126 = arith.constant 0.000000e+00 : f32
    %746 = vector.broadcast %cst_126 : f32 to vector<3x256xf32>
    %747 = arith.select %745, %743, %746 : vector<3x256xi1>, vector<3x256xf32>
    %748 = vector.extract_strided_slice %747 {offsets = [0, 0], sizes = [1, 256], strides = [1, 1]} : vector<3x256xf32> to vector<1x256xf32>
    %c7_127 = arith.constant 7 : index
    %749 = memref.load %arg2[%c7_127] : memref<81xf32, #tpu.memory_space<smem>>
    %750 = vector.broadcast %749 : f32 to vector<1x256xf32>
    %751 = arith.mulf %750, %748 : vector<1x256xf32>
    %752 = arith.addf %734, %751 : vector<1x256xf32>
    %c34_128 = arith.constant 34 : index
    %753 = memref.load %arg2[%c34_128] : memref<81xf32, #tpu.memory_space<smem>>
    %754 = vector.broadcast %753 : f32 to vector<1x256xf32>
    %755 = arith.mulf %754, %748 : vector<1x256xf32>
    %756 = arith.addf %738, %755 : vector<1x256xf32>
    %c61_129 = arith.constant 61 : index
    %757 = memref.load %arg2[%c61_129] : memref<81xf32, #tpu.memory_space<smem>>
    %758 = vector.broadcast %757 : f32 to vector<1x256xf32>
    %759 = arith.mulf %758, %748 : vector<1x256xf32>
    %760 = arith.addf %742, %759 : vector<1x256xf32>
    %761 = vector.extract_strided_slice %747 {offsets = [1, 0], sizes = [1, 256], strides = [1, 1]} : vector<3x256xf32> to vector<1x256xf32>
    %c16_130 = arith.constant 16 : index
    %762 = memref.load %arg2[%c16_130] : memref<81xf32, #tpu.memory_space<smem>>
    %763 = vector.broadcast %762 : f32 to vector<1x256xf32>
    %764 = arith.mulf %763, %761 : vector<1x256xf32>
    %765 = arith.addf %752, %764 : vector<1x256xf32>
    %c43_131 = arith.constant 43 : index
    %766 = memref.load %arg2[%c43_131] : memref<81xf32, #tpu.memory_space<smem>>
    %767 = vector.broadcast %766 : f32 to vector<1x256xf32>
    %768 = arith.mulf %767, %761 : vector<1x256xf32>
    %769 = arith.addf %756, %768 : vector<1x256xf32>
    %c70_132 = arith.constant 70 : index
    %770 = memref.load %arg2[%c70_132] : memref<81xf32, #tpu.memory_space<smem>>
    %771 = vector.broadcast %770 : f32 to vector<1x256xf32>
    %772 = arith.mulf %771, %761 : vector<1x256xf32>
    %773 = arith.addf %760, %772 : vector<1x256xf32>
    %774 = vector.extract_strided_slice %747 {offsets = [2, 0], sizes = [1, 256], strides = [1, 1]} : vector<3x256xf32> to vector<1x256xf32>
    %c25_133 = arith.constant 25 : index
    %775 = memref.load %arg2[%c25_133] : memref<81xf32, #tpu.memory_space<smem>>
    %776 = vector.broadcast %775 : f32 to vector<1x256xf32>
    %777 = arith.mulf %776, %774 : vector<1x256xf32>
    %778 = arith.addf %765, %777 : vector<1x256xf32>
    %c52_134 = arith.constant 52 : index
    %779 = memref.load %arg2[%c52_134] : memref<81xf32, #tpu.memory_space<smem>>
    %780 = vector.broadcast %779 : f32 to vector<1x256xf32>
    %781 = arith.mulf %780, %774 : vector<1x256xf32>
    %782 = arith.addf %769, %781 : vector<1x256xf32>
    %c79_135 = arith.constant 79 : index
    %783 = memref.load %arg2[%c79_135] : memref<81xf32, #tpu.memory_space<smem>>
    %784 = vector.broadcast %783 : f32 to vector<1x256xf32>
    %785 = arith.mulf %784, %774 : vector<1x256xf32>
    %786 = arith.addf %773, %785 : vector<1x256xf32>
    %c239_i32_136 = arith.constant 239 : i32
    %787 = tpu.dynamic_rotate %424 by %c239_i32_136 dim 1 : vector<3x256xf32>, i32 -> vector<3x256xf32>
    %c240_i32_137 = arith.constant 240 : i32
    %788 = vector.broadcast %c240_i32_137 : i32 to vector<3x256xi32>
    %789 = arith.cmpi slt, %0, %788 : vector<3x256xi32>
    %c14_i32_138 = arith.constant 14 : i32
    %790 = vector.broadcast %c14_i32_138 : i32 to vector<3x256xi32>
    %791 = arith.cmpi sle, %2, %790 : vector<3x256xi32>
    %792 = arith.andi %789, %791 : vector<3x256xi1>
    %cst_139 = arith.constant 0.000000e+00 : f32
    %793 = vector.broadcast %cst_139 : f32 to vector<3x256xf32>
    %794 = arith.select %792, %787, %793 : vector<3x256xi1>, vector<3x256xf32>
    %795 = vector.extract_strided_slice %794 {offsets = [0, 0], sizes = [1, 256], strides = [1, 1]} : vector<3x256xf32> to vector<1x256xf32>
    %c8_140 = arith.constant 8 : index
    %796 = memref.load %arg2[%c8_140] : memref<81xf32, #tpu.memory_space<smem>>
    %797 = vector.broadcast %796 : f32 to vector<1x256xf32>
    %798 = arith.mulf %797, %795 : vector<1x256xf32>
    %799 = arith.addf %778, %798 : vector<1x256xf32>
    %c35_141 = arith.constant 35 : index
    %800 = memref.load %arg2[%c35_141] : memref<81xf32, #tpu.memory_space<smem>>
    %801 = vector.broadcast %800 : f32 to vector<1x256xf32>
    %802 = arith.mulf %801, %795 : vector<1x256xf32>
    %803 = arith.addf %782, %802 : vector<1x256xf32>
    %c62_142 = arith.constant 62 : index
    %804 = memref.load %arg2[%c62_142] : memref<81xf32, #tpu.memory_space<smem>>
    %805 = vector.broadcast %804 : f32 to vector<1x256xf32>
    %806 = arith.mulf %805, %795 : vector<1x256xf32>
    %807 = arith.addf %786, %806 : vector<1x256xf32>
    %808 = vector.extract_strided_slice %794 {offsets = [1, 0], sizes = [1, 256], strides = [1, 1]} : vector<3x256xf32> to vector<1x256xf32>
    %c17_143 = arith.constant 17 : index
    %809 = memref.load %arg2[%c17_143] : memref<81xf32, #tpu.memory_space<smem>>
    %810 = vector.broadcast %809 : f32 to vector<1x256xf32>
    %811 = arith.mulf %810, %808 : vector<1x256xf32>
    %812 = arith.addf %799, %811 : vector<1x256xf32>
    %c44_144 = arith.constant 44 : index
    %813 = memref.load %arg2[%c44_144] : memref<81xf32, #tpu.memory_space<smem>>
    %814 = vector.broadcast %813 : f32 to vector<1x256xf32>
    %815 = arith.mulf %814, %808 : vector<1x256xf32>
    %816 = arith.addf %803, %815 : vector<1x256xf32>
    %c71_145 = arith.constant 71 : index
    %817 = memref.load %arg2[%c71_145] : memref<81xf32, #tpu.memory_space<smem>>
    %818 = vector.broadcast %817 : f32 to vector<1x256xf32>
    %819 = arith.mulf %818, %808 : vector<1x256xf32>
    %820 = arith.addf %807, %819 : vector<1x256xf32>
    %821 = vector.extract_strided_slice %794 {offsets = [2, 0], sizes = [1, 256], strides = [1, 1]} : vector<3x256xf32> to vector<1x256xf32>
    %c26_146 = arith.constant 26 : index
    %822 = memref.load %arg2[%c26_146] : memref<81xf32, #tpu.memory_space<smem>>
    %823 = vector.broadcast %822 : f32 to vector<1x256xf32>
    %824 = arith.mulf %823, %821 : vector<1x256xf32>
    %825 = arith.addf %812, %824 : vector<1x256xf32>
    %c53_147 = arith.constant 53 : index
    %826 = memref.load %arg2[%c53_147] : memref<81xf32, #tpu.memory_space<smem>>
    %827 = vector.broadcast %826 : f32 to vector<1x256xf32>
    %828 = arith.mulf %827, %821 : vector<1x256xf32>
    %829 = arith.addf %816, %828 : vector<1x256xf32>
    %c80_148 = arith.constant 80 : index
    %830 = memref.load %arg2[%c80_148] : memref<81xf32, #tpu.memory_space<smem>>
    %831 = vector.broadcast %830 : f32 to vector<1x256xf32>
    %832 = arith.mulf %831, %821 : vector<1x256xf32>
    %833 = arith.addf %820, %832 : vector<1x256xf32>
    %c1_149 = arith.constant 1 : index
    %c0_150 = arith.constant 0 : index
    %c0_151 = arith.constant 0 : index
    %834 = vector.load %arg4[%c1_149, %c0_150, %c0_151] : memref<2x3x256xf32, #tpu.memory_space<vmem>>, vector<1x1x256xf32>
    %835 = vector.shape_cast %834 : vector<1x1x256xf32> to vector<1x256xf32>
    %836 = vector.shape_cast %825 : vector<1x256xf32> to vector<1x1x256xf32>
    tpu.vector_store %arg4[%c1_149, %c0_150, %c0_151], %836 {strides = array<i32>} : memref<2x3x256xf32, #tpu.memory_space<vmem>>, vector<1x1x256xf32>,
    %c1_152 = arith.constant 1 : index
    %c1_153 = arith.constant 1 : index
    %c0_154 = arith.constant 0 : index
    %837 = vector.load %arg4[%c1_152, %c1_153, %c0_154] : memref<2x3x256xf32, #tpu.memory_space<vmem>>, vector<1x1x256xf32>
    %838 = vector.shape_cast %837 : vector<1x1x256xf32> to vector<1x256xf32>
    %839 = vector.shape_cast %829 : vector<1x256xf32> to vector<1x1x256xf32>
    tpu.vector_store %arg4[%c1_152, %c1_153, %c0_154], %839 {strides = array<i32>} : memref<2x3x256xf32, #tpu.memory_space<vmem>>, vector<1x1x256xf32>,
    %c1_155 = arith.constant 1 : index
    %c2_156 = arith.constant 2 : index
    %c0_157 = arith.constant 0 : index
    %840 = vector.load %arg4[%c1_155, %c2_156, %c0_157] : memref<2x3x256xf32, #tpu.memory_space<vmem>>, vector<1x1x256xf32>
    %841 = vector.shape_cast %840 : vector<1x1x256xf32> to vector<1x256xf32>
    %842 = vector.shape_cast %833 : vector<1x256xf32> to vector<1x1x256xf32>
    tpu.vector_store %arg4[%c1_155, %c2_156, %c0_157], %842 {strides = array<i32>} : memref<2x3x256xf32, #tpu.memory_space<vmem>>, vector<1x1x256xf32>,
    return
  }
  func.func @transform_0(%arg0: i32) -> (i32, i32, i32) {
    %c0_i32 = arith.constant 0 : i32
    %c0_i32_0 = arith.constant 0 : i32
    %c0_i32_1 = arith.constant 0 : i32
    return %arg0, %c0_i32, %c0_i32_0 : i32, i32, i32
  }
  func.func @transform_1(%arg0: i32) -> i32 {
    %c0_i32 = arith.constant 0 : i32
    %c0_i32_0 = arith.constant 0 : i32
    return %c0_i32 : i32
  }
  func.func @transform_2(%arg0: i32) -> i32 {
    %c0_i32 = arith.constant 0 : i32
    %c0_i32_0 = arith.constant 0 : i32
    return %c0_i32 : i32
  }
  func.func @transform_3(%arg0: i32) -> (i32, i32, i32) {
    %c0_i32 = arith.constant 0 : i32
    %c0_i32_0 = arith.constant 0 : i32
    %c0_i32_1 = arith.constant 0 : i32
    return %arg0, %c0_i32, %c0_i32_0 : i32, i32, i32
  }
}

</mosaic_0001>

<llo_original>
// kernel: tpu_custom_call.1
$region0: #{tpu_custom_call.1}
  #allocation0 [shape = 'u32[]', space=smem, size = 0x4, offset = 0x4, fixed_abs, tag = 'smem constant byte address 0x4 - core index']
  #allocation1 [shape = 'u32[144,128]{1,0:T(1,128)}', space=vmem, size = 0x12000, scoped, tag = 'internal scratch']
  %s0 = inlined_call_operand.vmem [shape: f32[2,3,256], index: 0, kind: input, shape index: {}]
  %s1 = inlined_call_operand.vmem [shape: f32[81], index: 1, kind: input, shape index: {}]
  %s2 = inlined_call_operand.vmem [shape: f32[3], index: 2, kind: input, shape index: {}]
  %s3 = inlined_call_operand.vmem [shape: f32[2,3,256], index: 3, kind: output, shape index: {}]
  %s4 = sld [smem:[#allocation0]]
  $region30: #{tpu_custom_call.1} parent=0
    _
  %s6 = ssub.s32 1, %s4
  %s7 = scalar_select 0, %s6, %s4
  $region1: #{tpu_custom_call.1} parent=0
    #allocation2 [shape = 'u8[512]{0}', space=smem, size = 0x200, scoped, tag = 'input window, operand 1, single buffered']
    #allocation3 [shape = 's32[1]{0}', space=sflag, size = 0x4, scoped, tag = 'scoped memory for tpu_custom_call.1']
    #allocation4 [shape = 'u8[512]{0}', space=smem, size = 0x200, scoped, tag = 'input window, operand 2, single buffered']
    #allocation5 [shape = 's32[1]{0}', space=sflag, size = 0x4, scoped, tag = 'scoped memory for tpu_custom_call.1']
    %8 = vsyncpa [#allocation3], 0
    %9 = vsyncpa [#allocation5], 0
    // Predicated region
    $region2: #{tpu_custom_call.1} parent=1 // pred_check
      _
    $region3: #{tpu_custom_call.1} parent=1 // pred_check_branch
      %11 = sbr.rel (0) target = $region5
    $region4: #{tpu_custom_call.1} parent=1 // pred_region
      _
    $region5: #{tpu_custom_call.1} parent=1 // pred_fallthru
      _
    // Predicated region
    $region6: #{tpu_custom_call.1} parent=1 // pred_check
      _
    $region7: #{tpu_custom_call.1} parent=1 // pred_check_branch
      %13 = sbr.rel (0) target = $region9
    $region8: #{tpu_custom_call.1} parent=1 // pred_region
      %s15 = ssub.s32 16, 16
      %16 = vsyncadd [#allocation3], %s15
      %s18 = sshll.u32 %s1, 4
      %s19 = int_to_ptr.vmem [resolvable:$true] %s18
      %21 = dma.vmem_to_smem %s19, 16, [#allocation2], [#allocation3]
    $region9: #{tpu_custom_call.1} parent=1 // pred_fallthru
      _
    // Predicated region
    $region10: #{tpu_custom_call.1} parent=1 // pred_check
      _
    $region11: #{tpu_custom_call.1} parent=1 // pred_check_branch
      %23 = sbr.rel (0) target = $region13
    $region12: #{tpu_custom_call.1} parent=1 // pred_region
      %s25 = ssub.s32 16, 16
      %26 = vsyncadd [#allocation5], %s25
      %s28 = sshll.u32 %s2, 4
      %s29 = int_to_ptr.vmem [resolvable:$true] %s28
      %31 = dma.vmem_to_smem %s29, 16, [#allocation4], [#allocation5]
    $region13: #{tpu_custom_call.1} parent=1 // pred_fallthru
      _
    // Predicated region
    $region14: #{tpu_custom_call.1} parent=1 // pred_check
      _
    $region15: #{tpu_custom_call.1} parent=1 // pred_check_branch
      %33 = sbr.rel (0) target = $region17
    $region16: #{tpu_custom_call.1} parent=1 // pred_region
      %34 = dma.done [#allocation3], 16
    $region17: #{tpu_custom_call.1} parent=1 // pred_fallthru
      _
    // Predicated region
    $region18: #{tpu_custom_call.1} parent=1 // pred_check
      _
    $region19: #{tpu_custom_call.1} parent=1 // pred_check_branch
      %36 = sbr.rel (0) target = $region21
    $region20: #{tpu_custom_call.1} parent=1 // pred_region
      %37 = dma.done [#allocation5], 16
    $region21: #{tpu_custom_call.1} parent=1 // pred_fallthru
      _
    %38 = sfence
    %v39 = vlaneseq
    %v40 = vand.u32 %v39, 127
    %v41 = vadd.s32 %v40, 128
    %v42 = vand.u32 %v40, 15
    %v43 = vand.u32 %v41, 15
    %v44 = vld [vmem:[%s0] sm:$0x77]
    %v46 = vcombine.high %v44, %v44
    %48 = vrot.lane.b32.xlu0 %v44, 17
    %v49 = vpop.permute.xlu0 %48
    %50 = vrot.lane.b32.xlu0 %v46, 17
    %v51 = vpop.permute.xlu0 %50
    %vm52 = vcmp.lt.s32.totalorder %v40, 17
    %v53 = vsel %vm52, %v49, %v51
    %v54 = vsel %vm52, %v51, %v49
    %vm55 = vcmp.ge.s32.totalorder %v40, 16
    %vm56 = vcmp.ge.s32.totalorder %v41, 16
    %vm57 = vcmp.ge.s32.totalorder %v42, 1
    %vm58 = vcmp.ge.s32.totalorder %v43, 1
    %vm59 = vmand %vm55, %vm57
    %vm60 = vmand %vm56, %vm58
    %v61 = vsel %vm59, %v54, 0.0
    %v62 = vsel %vm60, %v53, 0.0
    %s63 = sld [smem:[#allocation2]]
    %v64 = vstv %s63
    %v65 = vmul.f32 %v64, %v61
    %v66 = vmul.f32 %v64, %v62
    %s67 = sld [smem:[#allocation4]]
    %v68 = vstv %s67
    %v69 = vadd.f32 %v65, %v68
    %v70 = vadd.f32 %v66, %v68
    %s71 = sld [smem:[#allocation2 + $0x1b]]
    %v72 = vstv %s71
    %v73 = vmul.f32 %v72, %v61
    %v74 = vmul.f32 %v72, %v62
    %s75 = sld [smem:[#allocation4 + $0x1]]
    %v76 = vstv %s75
    %v77 = vadd.f32 %v73, %v76
    %v78 = vadd.f32 %v74, %v76
    %s79 = sld [smem:[#allocation2 + $0x36]]
    %v80 = vstv %s79
    %v81 = vmul.f32 %v80, %v61
    %v82 = vmul.f32 %v80, %v62
    %s83 = sld [smem:[#allocation4 + $0x2]]
    %v84 = vstv %s83
    %v85 = vadd.f32 %v81, %v84
    %v86 = vadd.f32 %v82, %v84
    %s87 = sld [smem:[#allocation2 + $0x9]]
    %v88 = vstv %s87
    %v89 = vmul.f32 %v88, %v61
    %v90 = vmul.f32 %v88, %v62
    %v93 = vrot.slane %v89, 1
    %v94 = vrot.slane %v90, 1
    %v97 = vadd.f32 %v69, %v93
    %v98 = vadd.f32 %v70, %v94
    %s99 = sld [smem:[#allocation2 + $0x24]]
    %v100 = vstv %s99
    %v101 = vmul.f32 %v100, %v61
    %v102 = vmul.f32 %v100, %v62
    %v105 = vrot.slane %v101, 1
    %v106 = vrot.slane %v102, 1
    %v109 = vadd.f32 %v77, %v105
    %v110 = vadd.f32 %v78, %v106
    %s111 = sld [smem:[#allocation2 + $0x3f]]
    %v112 = vstv %s111
    %v113 = vmul.f32 %v112, %v61
    %v114 = vmul.f32 %v112, %v62
    %v117 = vrot.slane %v113, 1
    %v118 = vrot.slane %v114, 1
    %v121 = vadd.f32 %v85, %v117
    %v122 = vadd.f32 %v86, %v118
    %s123 = sld [smem:[#allocation2 + $0x12]]
    %v124 = vstv %s123
    %v125 = vmul.f32 %v124, %v61
    %v126 = vmul.f32 %v124, %v62
    %v129 = vrot.slane %v125, 2
    %v130 = vrot.slane %v126, 2
    %v133 = vadd.f32 %v97, %v129
    %v134 = vadd.f32 %v98, %v130
    %s135 = sld [smem:[#allocation2 + $0x2d]]
    %v136 = vstv %s135
    %v137 = vmul.f32 %v136, %v61
    %v138 = vmul.f32 %v136, %v62
    %v141 = vrot.slane %v137, 2
    %v142 = vrot.slane %v138, 2
    %v145 = vadd.f32 %v109, %v141
    %v146 = vadd.f32 %v110, %v142
    %s147 = sld [smem:[#allocation2 + $0x48]]
    %v148 = vstv %s147
    %v149 = vmul.f32 %v148, %v61
    %v150 = vmul.f32 %v148, %v62
    %v153 = vrot.slane %v149, 2
    %v154 = vrot.slane %v150, 2
    %v157 = vadd.f32 %v121, %v153
    %v158 = vadd.f32 %v122, %v154
    %159 = vrot.lane.b32.xlu0 %v44, 16
    %v160 = vpop.permute.xlu0 %159
    %161 = vrot.lane.b32.xlu0 %v46, 16
    %v162 = vpop.permute.xlu0 %161
    %vm163 = vcmp.lt.s32.totalorder %v40, 16
    %v164 = vsel %vm163, %v160, %v162
    %v165 = vsel %vm163, %v162, %v160
    %v166 = vsel %vm55, %v165, 0.0
    %v167 = vsel %vm56, %v164, 0.0
    %s168 = sld [smem:[#allocation2 + $0x1]]
    %v169 = vstv %s168
    %v170 = vmul.f32 %v169, %v166
    %v171 = vmul.f32 %v169, %v167
    %v172 = vadd.f32 %v133, %v170
    %v173 = vadd.f32 %v134, %v171
    %s174 = sld [smem:[#allocation2 + $0x1c]]
    %v175 = vstv %s174
    %v176 = vmul.f32 %v175, %v166
    %v177 = vmul.f32 %v175, %v167
    %v178 = vadd.f32 %v145, %v176
    %v179 = vadd.f32 %v146, %v177
    %s180 = sld [smem:[#allocation2 + $0x37]]
    %v181 = vstv %s180
    %v182 = vmul.f32 %v181, %v166
    %v183 = vmul.f32 %v181, %v167
    %v184 = vadd.f32 %v157, %v182
    %v185 = vadd.f32 %v158, %v183
    %s186 = sld [smem:[#allocation2 + $0xa]]
    %v187 = vstv %s186
    %v188 = vmul.f32 %v187, %v166
    %v189 = vmul.f32 %v187, %v167
    %v192 = vrot.slane %v188, 1
    %v193 = vrot.slane %v189, 1
    %v196 = vadd.f32 %v172, %v192
    %v197 = vadd.f32 %v173, %v193
    %s198 = sld [smem:[#allocation2 + $0x25]]
    %v199 = vstv %s198
    %v200 = vmul.f32 %v199, %v166
    %v201 = vmul.f32 %v199, %v167
    %v204 = vrot.slane %v200, 1
    %v205 = vrot.slane %v201, 1
    %v208 = vadd.f32 %v178, %v204
    %v209 = vadd.f32 %v179, %v205
    %s210 = sld [smem:[#allocation2 + $0x40]]
    %v211 = vstv %s210
    %v212 = vmul.f32 %v211, %v166
    %v213 = vmul.f32 %v211, %v167
    %v216 = vrot.slane %v212, 1
    %v217 = vrot.slane %v213, 1
    %v220 = vadd.f32 %v184, %v216
    %v221 = vadd.f32 %v185, %v217
    %s222 = sld [smem:[#allocation2 + $0x13]]
    %v223 = vstv %s222
    %v224 = vmul.f32 %v223, %v166
    %v225 = vmul.f32 %v223, %v167
    %v228 = vrot.slane %v224, 2
    %v229 = vrot.slane %v225, 2
    %v232 = vadd.f32 %v196, %v228
    %v233 = vadd.f32 %v197, %v229
    %s234 = sld [smem:[#allocation2 + $0x2e]]
    %v235 = vstv %s234
    %v236 = vmul.f32 %v235, %v166
    %v237 = vmul.f32 %v235, %v167
    %v240 = vrot.slane %v236, 2
    %v241 = vrot.slane %v237, 2
    %v244 = vadd.f32 %v208, %v240
    %v245 = vadd.f32 %v209, %v241
    %s246 = sld [smem:[#allocation2 + $0x49]]
    %v247 = vstv %s246
    %v248 = vmul.f32 %v247, %v166
    %v249 = vmul.f32 %v247, %v167
    %v252 = vrot.slane %v248, 2
    %v253 = vrot.slane %v249, 2
    %v256 = vadd.f32 %v220, %v252
    %v257 = vadd.f32 %v221, %v253
    %258 = vrot.lane.b32.xlu0 %v44, 15
    %v259 = vpop.permute.xlu0 %258
    %260 = vrot.lane.b32.xlu0 %v46, 15
    %v261 = vpop.permute.xlu0 %260
    %vm262 = vcmp.lt.s32.totalorder %v40, 15
    %v263 = vsel %vm262, %v259, %v261
    %v264 = vsel %vm262, %v261, %v259
    %vm265 = vcmp.le.s32.totalorder %v42, 14
    %vm266 = vcmp.le.s32.totalorder %v43, 14
    %vm267 = vmand %vm55, %vm265
    %vm268 = vmand %vm56, %vm266
    %v269 = vsel %vm267, %v264, 0.0
    %v270 = vsel %vm268, %v263, 0.0
    %s271 = sld [smem:[#allocation2 + $0x2]]
    %v272 = vstv %s271
    %v273 = vmul.f32 %v272, %v269
    %v274 = vmul.f32 %v272, %v270
    %v275 = vadd.f32 %v232, %v273
    %v276 = vadd.f32 %v233, %v274
    %s277 = sld [smem:[#allocation2 + $0x1d]]
    %v278 = vstv %s277
    %v279 = vmul.f32 %v278, %v269
    %v280 = vmul.f32 %v278, %v270
    %v281 = vadd.f32 %v244, %v279
    %v282 = vadd.f32 %v245, %v280
    %s283 = sld [smem:[#allocation2 + $0x38]]
    %v284 = vstv %s283
    %v285 = vmul.f32 %v284, %v269
    %v286 = vmul.f32 %v284, %v270
    %v287 = vadd.f32 %v256, %v285
    %v288 = vadd.f32 %v257, %v286
    %s289 = sld [smem:[#allocation2 + $0xb]]
    %v290 = vstv %s289
    %v291 = vmul.f32 %v290, %v269
    %v292 = vmul.f32 %v290, %v270
    %v295 = vrot.slane %v291, 1
    %v296 = vrot.slane %v292, 1
    %v299 = vadd.f32 %v275, %v295
    %v300 = vadd.f32 %v276, %v296
    %s301 = sld [smem:[#allocation2 + $0x26]]
    %v302 = vstv %s301
    %v303 = vmul.f32 %v302, %v269
    %v304 = vmul.f32 %v302, %v270
    %v307 = vrot.slane %v303, 1
    %v308 = vrot.slane %v304, 1
    %v311 = vadd.f32 %v281, %v307
    %v312 = vadd.f32 %v282, %v308
    %s313 = sld [smem:[#allocation2 + $0x41]]
    %v314 = vstv %s313
    %v315 = vmul.f32 %v314, %v269
    %v316 = vmul.f32 %v314, %v270
    %v319 = vrot.slane %v315, 1
    %v320 = vrot.slane %v316, 1
    %v323 = vadd.f32 %v287, %v319
    %v324 = vadd.f32 %v288, %v320
    %s325 = sld [smem:[#allocation2 + $0x14]]
    %v326 = vstv %s325
    %v327 = vmul.f32 %v326, %v269
    %v328 = vmul.f32 %v326, %v270
    %v331 = vrot.slane %v327, 2
    %v332 = vrot.slane %v328, 2
    %v335 = vadd.f32 %v299, %v331
    %v336 = vadd.f32 %v300, %v332
    %s337 = sld [smem:[#allocation2 + $0x2f]]
    %v338 = vstv %s337
    %v339 = vmul.f32 %v338, %v269
    %v340 = vmul.f32 %v338, %v270
    %v343 = vrot.slane %v339, 2
    %v344 = vrot.slane %v340, 2
    %v347 = vadd.f32 %v311, %v343
    %v348 = vadd.f32 %v312, %v344
    %s349 = sld [smem:[#allocation2 + $0x4a]]
    %v350 = vstv %s349
    %v351 = vmul.f32 %v350, %v269
    %v352 = vmul.f32 %v350, %v270
    %v355 = vrot.slane %v351, 2
    %v356 = vrot.slane %v352, 2
    %v359 = vadd.f32 %v323, %v355
    %v360 = vadd.f32 %v324, %v356
    %361 = vrot.lane.b32.xlu0 %v44, 1
    %v362 = vpop.permute.xlu0 %361
    %363 = vrot.lane.b32.xlu0 %v46, 1
    %v364 = vpop.permute.xlu0 %363
    %vm365 = vcmp.lt.s32.totalorder %v40, 1
    %v366 = vsel %vm365, %v362, %v364
    %v367 = vsel %vm365, %v364, %v362
    %v368 = vsel %vm57, %v367, 0.0
    %v369 = vsel %vm58, %v366, 0.0
    %s370 = sld [smem:[#allocation2 + $0x3]]
    %v371 = vstv %s370
    %v372 = vmul.f32 %v371, %v368
    %v373 = vmul.f32 %v371, %v369
    %v374 = vadd.f32 %v335, %v372
    %v375 = vadd.f32 %v336, %v373
    %s376 = sld [smem:[#allocation2 + $0x1e]]
    %v377 = vstv %s376
    %v378 = vmul.f32 %v377, %v368
    %v379 = vmul.f32 %v377, %v369
    %v380 = vadd.f32 %v347, %v378
    %v381 = vadd.f32 %v348, %v379
    %s382 = sld [smem:[#allocation2 + $0x39]]
    %v383 = vstv %s382
    %v384 = vmul.f32 %v383, %v368
    %v385 = vmul.f32 %v383, %v369
    %v386 = vadd.f32 %v359, %v384
    %v387 = vadd.f32 %v360, %v385
    %s388 = sld [smem:[#allocation2 + $0xc]]
    %v389 = vstv %s388
    %v390 = vmul.f32 %v389, %v368
    %v391 = vmul.f32 %v389, %v369
    %v394 = vrot.slane %v390, 1
    %v395 = vrot.slane %v391, 1
    %v398 = vadd.f32 %v374, %v394
    %v399 = vadd.f32 %v375, %v395
    %s400 = sld [smem:[#allocation2 + $0x27]]
    %v401 = vstv %s400
    %v402 = vmul.f32 %v401, %v368
    %v403 = vmul.f32 %v401, %v369
    %v406 = vrot.slane %v402, 1
    %v407 = vrot.slane %v403, 1
    %v410 = vadd.f32 %v380, %v406
    %v411 = vadd.f32 %v381, %v407
    %s412 = sld [smem:[#allocation2 + $0x42]]
    %v413 = vstv %s412
    %v414 = vmul.f32 %v413, %v368
    %v415 = vmul.f32 %v413, %v369
    %v418 = vrot.slane %v414, 1
    %v419 = vrot.slane %v415, 1
    %v422 = vadd.f32 %v386, %v418
    %v423 = vadd.f32 %v387, %v419
    %s424 = sld [smem:[#allocation2 + $0x15]]
    %v425 = vstv %s424
    %v426 = vmul.f32 %v425, %v368
    %v427 = vmul.f32 %v425, %v369
    %v430 = vrot.slane %v426, 2
    %v431 = vrot.slane %v427, 2
    %v434 = vadd.f32 %v398, %v430
    %v435 = vadd.f32 %v399, %v431
    %s436 = sld [smem:[#allocation2 + $0x30]]
    %v437 = vstv %s436
    %v438 = vmul.f32 %v437, %v368
    %v439 = vmul.f32 %v437, %v369
    %v442 = vrot.slane %v438, 2
    %v443 = vrot.slane %v439, 2
    %v446 = vadd.f32 %v410, %v442
    %v447 = vadd.f32 %v411, %v443
    %s448 = sld [smem:[#allocation2 + $0x4b]]
    %v449 = vstv %s448
    %v450 = vmul.f32 %v449, %v368
    %v451 = vmul.f32 %v449, %v369
    %v454 = vrot.slane %v450, 2
    %v455 = vrot.slane %v451, 2
    %v458 = vadd.f32 %v422, %v454
    %v459 = vadd.f32 %v423, %v455
    %s460 = sld [smem:[#allocation2 + $0x4]]
    %v461 = vstv %s460
    %v462 = vmul.f32 %v461, %v44
    %v464 = vlaneseq
    %v465 = vshrl.u32 %v464, 7
    %v466 = vsub.s32 0, %v465
    %v467 = vrot.slane %v462, %v466
    %v468 = vlaneseq
    %v469 = vshrl.u32 %v468, 7
    %v470 = vsub.s32 4, %v469
    %v471 = vrot.slane %v462, %v470
    %v474 = vadd.f32 %v434, %v467
    %v475 = vadd.f32 %v435, %v471
    %s476 = sld [smem:[#allocation2 + $0x1f]]
    %v477 = vstv %s476
    %v478 = vmul.f32 %v477, %v44
    %v480 = vlaneseq
    %v481 = vshrl.u32 %v480, 7
    %v482 = vsub.s32 0, %v481
    %v483 = vrot.slane %v478, %v482
    %v484 = vlaneseq
    %v485 = vshrl.u32 %v484, 7
    %v486 = vsub.s32 4, %v485
    %v487 = vrot.slane %v478, %v486
    %v490 = vadd.f32 %v446, %v483
    %v491 = vadd.f32 %v447, %v487
    %s492 = sld [smem:[#allocation2 + $0x3a]]
    %v493 = vstv %s492
    %v494 = vmul.f32 %v493, %v44
    %v496 = vlaneseq
    %v497 = vshrl.u32 %v496, 7
    %v498 = vsub.s32 0, %v497
    %v499 = vrot.slane %v494, %v498
    %v500 = vlaneseq
    %v501 = vshrl.u32 %v500, 7
    %v502 = vsub.s32 4, %v501
    %v503 = vrot.slane %v494, %v502
    %v506 = vadd.f32 %v458, %v499
    %v507 = vadd.f32 %v459, %v503
    %s508 = sld [smem:[#allocation2 + $0xd]]
    %v509 = vstv %s508
    %v510 = vmul.f32 %v509, %v44
    %v512 = vlaneseq
    %v513 = vshrl.u32 %v512, 7
    %v514 = vsub.s32 1, %v513
    %v515 = vrot.slane %v510, %v514
    %v516 = vlaneseq
    %v517 = vshrl.u32 %v516, 7
    %v518 = vsub.s32 5, %v517
    %v519 = vrot.slane %v510, %v518
    %v522 = vadd.f32 %v474, %v515
    %v523 = vadd.f32 %v475, %v519
    %s524 = sld [smem:[#allocation2 + $0x28]]
    %v525 = vstv %s524
    %v526 = vmul.f32 %v525, %v44
    %v528 = vlaneseq
    %v529 = vshrl.u32 %v528, 7
    %v530 = vsub.s32 1, %v529
    %v531 = vrot.slane %v526, %v530
    %v532 = vlaneseq
    %v533 = vshrl.u32 %v532, 7
    %v534 = vsub.s32 5, %v533
    %v535 = vrot.slane %v526, %v534
    %v538 = vadd.f32 %v490, %v531
    %v539 = vadd.f32 %v491, %v535
    %s540 = sld [smem:[#allocation2 + $0x43]]
    %v541 = vstv %s540
    %v542 = vmul.f32 %v541, %v44
    %v544 = vlaneseq
    %v545 = vshrl.u32 %v544, 7
    %v546 = vsub.s32 1, %v545
    %v547 = vrot.slane %v542, %v546
    %v548 = vlaneseq
    %v549 = vshrl.u32 %v548, 7
    %v550 = vsub.s32 5, %v549
    %v551 = vrot.slane %v542, %v550
    %v554 = vadd.f32 %v506, %v547
    %v555 = vadd.f32 %v507, %v551
    %s556 = sld [smem:[#allocation2 + $0x16]]
    %v557 = vstv %s556
    %v558 = vmul.f32 %v557, %v44
    %v560 = vlaneseq
    %v561 = vshrl.u32 %v560, 7
    %v562 = vsub.s32 2, %v561
    %v563 = vrot.slane %v558, %v562
    %v564 = vlaneseq
    %v565 = vshrl.u32 %v564, 7
    %v566 = vsub.s32 6, %v565
    %v567 = vrot.slane %v558, %v566
    %v570 = vadd.f32 %v522, %v563
    %v571 = vadd.f32 %v523, %v567
    %s572 = sld [smem:[#allocation2 + $0x31]]
    %v573 = vstv %s572
    %v574 = vmul.f32 %v573, %v44
    %v576 = vlaneseq
    %v577 = vshrl.u32 %v576, 7
    %v578 = vsub.s32 2, %v577
    %v579 = vrot.slane %v574, %v578
    %v580 = vlaneseq
    %v581 = vshrl.u32 %v580, 7
    %v582 = vsub.s32 6, %v581
    %v583 = vrot.slane %v574, %v582
    %v586 = vadd.f32 %v538, %v579
    %v587 = vadd.f32 %v539, %v583
    %s588 = sld [smem:[#allocation2 + $0x4c]]
    %v589 = vstv %s588
    %v590 = vmul.f32 %v589, %v44
    %v592 = vlaneseq
    %v593 = vshrl.u32 %v592, 7
    %v594 = vsub.s32 2, %v593
    %v595 = vrot.slane %v590, %v594
    %v596 = vlaneseq
    %v597 = vshrl.u32 %v596, 7
    %v598 = vsub.s32 6, %v597
    %v599 = vrot.slane %v590, %v598
    %v602 = vadd.f32 %v554, %v595
    %v603 = vadd.f32 %v555, %v599
    %604 = vrot.lane.b32.xlu0 %v44, 127
    %v605 = vpop.permute.xlu0 %604
    %606 = vrot.lane.b32.xlu0 %v46, 127
    %v607 = vpop.permute.xlu0 %606
    %vm608 = vcmp.lt.s32.totalorder %v40, 127
    %v609 = vsel %vm608, %v605, %v607
    %v610 = vsel %vm608, %v607, %v605
    %v611 = vsel %vm265, %v609, 0.0
    %v612 = vsel %vm266, %v610, 0.0
    %s613 = sld [smem:[#allocation2 + $0x5]]
    %v614 = vstv %s613
    %v615 = vmul.f32 %v614, %v611
    %v616 = vmul.f32 %v614, %v612
    %v617 = vadd.f32 %v570, %v615
    %v618 = vadd.f32 %v571, %v616
    %s619 = sld [smem:[#allocation2 + $0x20]]
    %v620 = vstv %s619
    %v621 = vmul.f32 %v620, %v611
    %v622 = vmul.f32 %v620, %v612
    %v623 = vadd.f32 %v586, %v621
    %v624 = vadd.f32 %v587, %v622
    %s625 = sld [smem:[#allocation2 + $0x3b]]
    %v626 = vstv %s625
    %v627 = vmul.f32 %v626, %v611
    %v628 = vmul.f32 %v626, %v612
    %v629 = vadd.f32 %v602, %v627
    %v630 = vadd.f32 %v603, %v628
    %s631 = sld [smem:[#allocation2 + $0xe]]
    %v632 = vstv %s631
    %v633 = vmul.f32 %v632, %v611
    %v634 = vmul.f32 %v632, %v612
    %v637 = vrot.slane %v633, 1
    %v638 = vrot.slane %v634, 1
    %v641 = vadd.f32 %v617, %v637
    %v642 = vadd.f32 %v618, %v638
    %s643 = sld [smem:[#allocation2 + $0x29]]
    %v644 = vstv %s643
    %v645 = vmul.f32 %v644, %v611
    %v646 = vmul.f32 %v644, %v612
    %v649 = vrot.slane %v645, 1
    %v650 = vrot.slane %v646, 1
    %v653 = vadd.f32 %v623, %v649
    %v654 = vadd.f32 %v624, %v650
    %s655 = sld [smem:[#allocation2 + $0x44]]
    %v656 = vstv %s655
    %v657 = vmul.f32 %v656, %v611
    %v658 = vmul.f32 %v656, %v612
    %v661 = vrot.slane %v657, 1
    %v662 = vrot.slane %v658, 1
    %v665 = vadd.f32 %v629, %v661
    %v666 = vadd.f32 %v630, %v662
    %s667 = sld [smem:[#allocation2 + $0x17]]
    %v668 = vstv %s667
    %v669 = vmul.f32 %v668, %v611
    %v670 = vmul.f32 %v668, %v612
    %v673 = vrot.slane %v669, 2
    %v674 = vrot.slane %v670, 2
    %v677 = vadd.f32 %v641, %v673
    %v678 = vadd.f32 %v642, %v674
    %s679 = sld [smem:[#allocation2 + $0x32]]
    %v680 = vstv %s679
    %v681 = vmul.f32 %v680, %v611
    %v682 = vmul.f32 %v680, %v612
    %v685 = vrot.slane %v681, 2
    %v686 = vrot.slane %v682, 2
    %v689 = vadd.f32 %v653, %v685
    %v690 = vadd.f32 %v654, %v686
    %s691 = sld [smem:[#allocation2 + $0x4d]]
    %v692 = vstv %s691
    %v693 = vmul.f32 %v692, %v611
    %v694 = vmul.f32 %v692, %v612
    %v697 = vrot.slane %v693, 2
    %v698 = vrot.slane %v694, 2
    %v701 = vadd.f32 %v665, %v697
    %v702 = vadd.f32 %v666, %v698
    %703 = vrot.lane.b32.xlu0 %v44, 113
    %v704 = vpop.permute.xlu0 %703
    %705 = vrot.lane.b32.xlu0 %v46, 113
    %v706 = vpop.permute.xlu0 %705
    %vm707 = vcmp.lt.s32.totalorder %v40, 113
    %v708 = vsel %vm707, %v704, %v706
    %v709 = vsel %vm707, %v706, %v704
    %vm710 = vcmp.lt.s32.totalorder %v40, 240
    %vm711 = vcmp.lt.s32.totalorder %v41, 240
    %vm712 = vmand %vm710, %vm57
    %vm713 = vmand %vm711, %vm58
    %v714 = vsel %vm712, %v708, 0.0
    %v715 = vsel %vm713, %v709, 0.0
    %s716 = sld [smem:[#allocation2 + $0x6]]
    %v717 = vstv %s716
    %v718 = vmul.f32 %v717, %v714
    %v719 = vmul.f32 %v717, %v715
    %v720 = vadd.f32 %v677, %v718
    %v721 = vadd.f32 %v678, %v719
    %s722 = sld [smem:[#allocation2 + $0x21]]
    %v723 = vstv %s722
    %v724 = vmul.f32 %v723, %v714
    %v725 = vmul.f32 %v723, %v715
    %v726 = vadd.f32 %v689, %v724
    %v727 = vadd.f32 %v690, %v725
    %s728 = sld [smem:[#allocation2 + $0x3c]]
    %v729 = vstv %s728
    %v730 = vmul.f32 %v729, %v714
    %v731 = vmul.f32 %v729, %v715
    %v732 = vadd.f32 %v701, %v730
    %v733 = vadd.f32 %v702, %v731
    %s734 = sld [smem:[#allocation2 + $0xf]]
    %v735 = vstv %s734
    %v736 = vmul.f32 %v735, %v714
    %v737 = vmul.f32 %v735, %v715
    %v740 = vrot.slane %v736, 1
    %v741 = vrot.slane %v737, 1
    %v744 = vadd.f32 %v720, %v740
    %v745 = vadd.f32 %v721, %v741
    %s746 = sld [smem:[#allocation2 + $0x2a]]
    %v747 = vstv %s746
    %v748 = vmul.f32 %v747, %v714
    %v749 = vmul.f32 %v747, %v715
    %v752 = vrot.slane %v748, 1
    %v753 = vrot.slane %v749, 1
    %v756 = vadd.f32 %v726, %v752
    %v757 = vadd.f32 %v727, %v753
    %s758 = sld [smem:[#allocation2 + $0x45]]
    %v759 = vstv %s758
    %v760 = vmul.f32 %v759, %v714
    %v761 = vmul.f32 %v759, %v715
    %v764 = vrot.slane %v760, 1
    %v765 = vrot.slane %v761, 1
    %v768 = vadd.f32 %v732, %v764
    %v769 = vadd.f32 %v733, %v765
    %s770 = sld [smem:[#allocation2 + $0x18]]
    %v771 = vstv %s770
    %v772 = vmul.f32 %v771, %v714
    %v773 = vmul.f32 %v771, %v715
    %v776 = vrot.slane %v772, 2
    %v777 = vrot.slane %v773, 2
    %v780 = vadd.f32 %v744, %v776
    %v781 = vadd.f32 %v745, %v777
    %s782 = sld [smem:[#allocation2 + $0x33]]
    %v783 = vstv %s782
    %v784 = vmul.f32 %v783, %v714
    %v785 = vmul.f32 %v783, %v715
    %v788 = vrot.slane %v784, 2
    %v789 = vrot.slane %v785, 2
    %v792 = vadd.f32 %v756, %v788
    %v793 = vadd.f32 %v757, %v789
    %s794 = sld [smem:[#allocation2 + $0x4e]]
    %v795 = vstv %s794
    %v796 = vmul.f32 %v795, %v714
    %v797 = vmul.f32 %v795, %v715
    %v800 = vrot.slane %v796, 2
    %v801 = vrot.slane %v797, 2
    %v804 = vadd.f32 %v768, %v800
    %v805 = vadd.f32 %v769, %v801
    %806 = vrot.lane.b32.xlu0 %v44, 112
    %v807 = vpop.permute.xlu0 %806
    %808 = vrot.lane.b32.xlu0 %v46, 112
    %v809 = vpop.permute.xlu0 %808
    %vm810 = vcmp.lt.s32.totalorder %v40, 112
    %v811 = vsel %vm810, %v807, %v809
    %v812 = vsel %vm810, %v809, %v807
    %v813 = vsel %vm710, %v811, 0.0
    %v814 = vsel %vm711, %v812, 0.0
    %s815 = sld [smem:[#allocation2 + $0x7]]
    %v816 = vstv %s815
    %v817 = vmul.f32 %v816, %v813
    %v818 = vmul.f32 %v816, %v814
    %v819 = vadd.f32 %v780, %v817
    %v820 = vadd.f32 %v781, %v818
    %s821 = sld [smem:[#allocation2 + $0x22]]
    %v822 = vstv %s821
    %v823 = vmul.f32 %v822, %v813
    %v824 = vmul.f32 %v822, %v814
    %v825 = vadd.f32 %v792, %v823
    %v826 = vadd.f32 %v793, %v824
    %s827 = sld [smem:[#allocation2 + $0x3d]]
    %v828 = vstv %s827
    %v829 = vmul.f32 %v828, %v813
    %v830 = vmul.f32 %v828, %v814
    %v831 = vadd.f32 %v804, %v829
    %v832 = vadd.f32 %v805, %v830
    %s833 = sld [smem:[#allocation2 + $0x10]]
    %v834 = vstv %s833
    %v835 = vmul.f32 %v834, %v813
    %v836 = vmul.f32 %v834, %v814
    %v839 = vrot.slane %v835, 1
    %v840 = vrot.slane %v836, 1
    %v843 = vadd.f32 %v819, %v839
    %v844 = vadd.f32 %v820, %v840
    %s845 = sld [smem:[#allocation2 + $0x2b]]
    %v846 = vstv %s845
    %v847 = vmul.f32 %v846, %v813
    %v848 = vmul.f32 %v846, %v814
    %v851 = vrot.slane %v847, 1
    %v852 = vrot.slane %v848, 1
    %v855 = vadd.f32 %v825, %v851
    %v856 = vadd.f32 %v826, %v852
    %s857 = sld [smem:[#allocation2 + $0x46]]
    %v858 = vstv %s857
    %v859 = vmul.f32 %v858, %v813
    %v860 = vmul.f32 %v858, %v814
    %v863 = vrot.slane %v859, 1
    %v864 = vrot.slane %v860, 1
    %v867 = vadd.f32 %v831, %v863
    %v868 = vadd.f32 %v832, %v864
    %s869 = sld [smem:[#allocation2 + $0x19]]
    %v870 = vstv %s869
    %v871 = vmul.f32 %v870, %v813
    %v872 = vmul.f32 %v870, %v814
    %v875 = vrot.slane %v871, 2
    %v876 = vrot.slane %v872, 2
    %v879 = vadd.f32 %v843, %v875
    %v880 = vadd.f32 %v844, %v876
    %s881 = sld [smem:[#allocation2 + $0x34]]
    %v882 = vstv %s881
    %v883 = vmul.f32 %v882, %v813
    %v884 = vmul.f32 %v882, %v814
    %v887 = vrot.slane %v883, 2
    %v888 = vrot.slane %v884, 2
    %v891 = vadd.f32 %v855, %v887
    %v892 = vadd.f32 %v856, %v888
    %s893 = sld [smem:[#allocation2 + $0x4f]]
    %v894 = vstv %s893
    %v895 = vmul.f32 %v894, %v813
    %v896 = vmul.f32 %v894, %v814
    %v899 = vrot.slane %v895, 2
    %v900 = vrot.slane %v896, 2
    %v903 = vadd.f32 %v867, %v899
    %v904 = vadd.f32 %v868, %v900
    %905 = vrot.lane.b32.xlu0 %v44, 111
    %v906 = vpop.permute.xlu0 %905
    %907 = vrot.lane.b32.xlu0 %v46, 111
    %v908 = vpop.permute.xlu0 %907
    %vm909 = vcmp.lt.s32.totalorder %v40, 111
    %v910 = vsel %vm909, %v906, %v908
    %v911 = vsel %vm909, %v908, %v906
    %vm912 = vmand %vm710, %vm265
    %vm913 = vmand %vm711, %vm266
    %v914 = vsel %vm912, %v910, 0.0
    %v915 = vsel %vm913, %v911, 0.0
    %s916 = sld [smem:[#allocation2 + $0x8]]
    %v917 = vstv %s916
    %v918 = vmul.f32 %v917, %v914
    %v919 = vmul.f32 %v917, %v915
    %v920 = vadd.f32 %v879, %v918
    %v921 = vadd.f32 %v880, %v919
    %s922 = sld [smem:[#allocation2 + $0x23]]
    %v923 = vstv %s922
    %v924 = vmul.f32 %v923, %v914
    %v925 = vmul.f32 %v923, %v915
    %v926 = vadd.f32 %v891, %v924
    %v927 = vadd.f32 %v892, %v925
    %s928 = sld [smem:[#allocation2 + $0x3e]]
    %v929 = vstv %s928
    %v930 = vmul.f32 %v929, %v914
    %v931 = vmul.f32 %v929, %v915
    %v932 = vadd.f32 %v903, %v930
    %v933 = vadd.f32 %v904, %v931
    %s934 = sld [smem:[#allocation2 + $0x11]]
    %v935 = vstv %s934
    %v936 = vmul.f32 %v935, %v914
    %v937 = vmul.f32 %v935, %v915
    %v940 = vrot.slane %v936, 1
    %v941 = vrot.slane %v937, 1
    %v944 = vadd.f32 %v920, %v940
    %v945 = vadd.f32 %v921, %v941
    %s946 = sld [smem:[#allocation2 + $0x2c]]
    %v947 = vstv %s946
    %v948 = vmul.f32 %v947, %v914
    %v949 = vmul.f32 %v947, %v915
    %v952 = vrot.slane %v948, 1
    %v953 = vrot.slane %v949, 1
    %v956 = vadd.f32 %v926, %v952
    %v957 = vadd.f32 %v927, %v953
    %s958 = sld [smem:[#allocation2 + $0x47]]
    %v959 = vstv %s958
    %v960 = vmul.f32 %v959, %v914
    %v961 = vmul.f32 %v959, %v915
    %v964 = vrot.slane %v960, 1
    %v965 = vrot.slane %v961, 1
    %v968 = vadd.f32 %v932, %v964
    %v969 = vadd.f32 %v933, %v965
    %s970 = sld [smem:[#allocation2 + $0x1a]]
    %v971 = vstv %s970
    %v972 = vmul.f32 %v971, %v914
    %v973 = vmul.f32 %v971, %v915
    %v976 = vrot.slane %v972, 2
    %v977 = vrot.slane %v973, 2
    %v980 = vadd.f32 %v944, %v976
    %v981 = vadd.f32 %v945, %v977
    %s982 = sld [smem:[#allocation2 + $0x35]]
    %v983 = vstv %s982
    %v984 = vmul.f32 %v983, %v914
    %v985 = vmul.f32 %v983, %v915
    %v988 = vrot.slane %v984, 2
    %v989 = vrot.slane %v985, 2
    %v992 = vadd.f32 %v956, %v988
    %v993 = vadd.f32 %v957, %v989
    %s994 = sld [smem:[#allocation2 + $0x50]]
    %v995 = vstv %s994
    %v996 = vmul.f32 %v995, %v914
    %v997 = vmul.f32 %v995, %v915
    %v1000 = vrot.slane %v996, 2
    %v1001 = vrot.slane %v997, 2
    %v1004 = vadd.f32 %v968, %v1000
    %v1005 = vadd.f32 %v969, %v1001
    %v1008 = vcombine.low %v980, %v981
    %v1010 = vunpack.c.l.s4 1966171168
    %v1011 = vunpack.c.0.s8 %v1010
    %v1012 = vlaneseq
    %v1013 = vshrl.u32 %v1012, 7
    %v1014 = vsub.s32 %v1011, %v1013
    %v1015 = vrot.slane %v1008, %v1014
    %v1017 = vunpack.c.l.s4 1966171168
    %v1018 = vunpack.c.0.s8 %v1017
    %v1019 = vlaneseq
    %v1020 = vshrl.u32 %v1019, 7
    %v1021 = vsub.s32 %v1018, %v1020
    %v1022 = vrot.slane %v1015, %v1021
    %v1024 = vlaneseq
    %vm1025 = vcmp.ge.s32.totalorder %v1024, 0
    %vm1026 = vcmp.lt.s32.totalorder %v1024, 256
    %vm1027 = vmand %vm1025, %vm1026
    %1028 = vst.msk [vmem:[%s3] ss:$4 sm:$0x3] %vm1027, %v1022
    %v1031 = vcombine.low %v992, %v993
    %v1033 = vunpack.c.l.s4 1966171168
    %v1034 = vunpack.c.0.s8 %v1033
    %v1035 = vlaneseq
    %v1036 = vshrl.u32 %v1035, 7
    %v1037 = vsub.s32 %v1034, %v1036
    %v1038 = vrot.slane %v1031, %v1037
    %v1040 = vunpack.c.l.s4 1966171168
    %v1041 = vunpack.c.0.s8 %v1040
    %v1042 = vlaneseq
    %v1043 = vshrl.u32 %v1042, 7
    %v1044 = vsub.s32 %v1041, %v1043
    %v1045 = vrot.slane %v1038, %v1044
    %s1047 = scalar_lea.vmem %s3, 1
    %1048 = vst.msk [vmem:[%s1047] ss:$4 sm:$0x3] %vm1027, %v1045
    %v1051 = vcombine.low %v1004, %v1005
    %v1053 = vunpack.c.l.s4 1966171168
    %v1054 = vunpack.c.0.s8 %v1053
    %v1055 = vlaneseq
    %v1056 = vshrl.u32 %v1055, 7
    %v1057 = vsub.s32 %v1054, %v1056
    %v1058 = vrot.slane %v1051, %v1057
    %v1060 = vunpack.c.l.s4 1966171168
    %v1061 = vunpack.c.0.s8 %v1060
    %v1062 = vlaneseq
    %v1063 = vshrl.u32 %v1062, 7
    %v1064 = vsub.s32 %v1061, %v1063
    %v1065 = vrot.slane %v1058, %v1064
    %s1067 = scalar_lea.vmem %s3, 2
    %1068 = vst.msk [vmem:[%s1067] ss:$4 sm:$0x3] %vm1027, %v1065
    %s1069 = scalar_lea.vmem %s0, 8
    %v1070 = vld [vmem:[%s1069] sm:$0x77]
    %v1072 = vcombine.high %v1070, %v1070
    %1074 = vrot.lane.b32.xlu0 %v1070, 17
    %v1075 = vpop.permute.xlu0 %1074
    %1076 = vrot.lane.b32.xlu0 %v1072, 17
    %v1077 = vpop.permute.xlu0 %1076
    %v1078 = vsel %vm52, %v1075, %v1077
    %v1079 = vsel %vm52, %v1077, %v1075
    %v1080 = vsel %vm59, %v1079, 0.0
    %v1081 = vsel %vm60, %v1078, 0.0
    %s1082 = sld [smem:[#allocation2]]
    %v1083 = vstv %s1082
    %v1084 = vmul.f32 %v1083, %v1080
    %v1085 = vmul.f32 %v1083, %v1081
    %s1086 = sld [smem:[#allocation4]]
    %v1087 = vstv %s1086
    %v1088 = vadd.f32 %v1084, %v1087
    %v1089 = vadd.f32 %v1085, %v1087
    %s1090 = sld [smem:[#allocation2 + $0x1b]]
    %v1091 = vstv %s1090
    %v1092 = vmul.f32 %v1091, %v1080
    %v1093 = vmul.f32 %v1091, %v1081
    %s1094 = sld [smem:[#allocation4 + $0x1]]
    %v1095 = vstv %s1094
    %v1096 = vadd.f32 %v1092, %v1095
    %v1097 = vadd.f32 %v1093, %v1095
    %s1098 = sld [smem:[#allocation2 + $0x36]]
    %v1099 = vstv %s1098
    %v1100 = vmul.f32 %v1099, %v1080
    %v1101 = vmul.f32 %v1099, %v1081
    %s1102 = sld [smem:[#allocation4 + $0x2]]
    %v1103 = vstv %s1102
    %v1104 = vadd.f32 %v1100, %v1103
    %v1105 = vadd.f32 %v1101, %v1103
    %s1106 = sld [smem:[#allocation2 + $0x9]]
    %v1107 = vstv %s1106
    %v1108 = vmul.f32 %v1107, %v1080
    %v1109 = vmul.f32 %v1107, %v1081
    %v1112 = vrot.slane %v1108, 1
    %v1113 = vrot.slane %v1109, 1
    %v1116 = vadd.f32 %v1088, %v1112
    %v1117 = vadd.f32 %v1089, %v1113
    %s1118 = sld [smem:[#allocation2 + $0x24]]
    %v1119 = vstv %s1118
    %v1120 = vmul.f32 %v1119, %v1080
    %v1121 = vmul.f32 %v1119, %v1081
    %v1124 = vrot.slane %v1120, 1
    %v1125 = vrot.slane %v1121, 1
    %v1128 = vadd.f32 %v1096, %v1124
    %v1129 = vadd.f32 %v1097, %v1125
    %s1130 = sld [smem:[#allocation2 + $0x3f]]
    %v1131 = vstv %s1130
    %v1132 = vmul.f32 %v1131, %v1080
    %v1133 = vmul.f32 %v1131, %v1081
    %v1136 = vrot.slane %v1132, 1
    %v1137 = vrot.slane %v1133, 1
    %v1140 = vadd.f32 %v1104, %v1136
    %v1141 = vadd.f32 %v1105, %v1137
    %s1142 = sld [smem:[#allocation2 + $0x12]]
    %v1143 = vstv %s1142
    %v1144 = vmul.f32 %v1143, %v1080
    %v1145 = vmul.f32 %v1143, %v1081
    %v1148 = vrot.slane %v1144, 2
    %v1149 = vrot.slane %v1145, 2
    %v1152 = vadd.f32 %v1116, %v1148
    %v1153 = vadd.f32 %v1117, %v1149
    %s1154 = sld [smem:[#allocation2 + $0x2d]]
    %v1155 = vstv %s1154
    %v1156 = vmul.f32 %v1155, %v1080
    %v1157 = vmul.f32 %v1155, %v1081
    %v1160 = vrot.slane %v1156, 2
    %v1161 = vrot.slane %v1157, 2
    %v1164 = vadd.f32 %v1128, %v1160
    %v1165 = vadd.f32 %v1129, %v1161
    %s1166 = sld [smem:[#allocation2 + $0x48]]
    %v1167 = vstv %s1166
    %v1168 = vmul.f32 %v1167, %v1080
    %v1169 = vmul.f32 %v1167, %v1081
    %v1172 = vrot.slane %v1168, 2
    %v1173 = vrot.slane %v1169, 2
    %v1176 = vadd.f32 %v1140, %v1172
    %v1177 = vadd.f32 %v1141, %v1173
    %1178 = vrot.lane.b32.xlu0 %v1070, 16
    %v1179 = vpop.permute.xlu0 %1178
    %1180 = vrot.lane.b32.xlu0 %v1072, 16
    %v1181 = vpop.permute.xlu0 %1180
    %v1182 = vsel %vm163, %v1179, %v1181
    %v1183 = vsel %vm163, %v1181, %v1179
    %v1184 = vsel %vm55, %v1183, 0.0
    %v1185 = vsel %vm56, %v1182, 0.0
    %s1186 = sld [smem:[#allocation2 + $0x1]]
    %v1187 = vstv %s1186
    %v1188 = vmul.f32 %v1187, %v1184
    %v1189 = vmul.f32 %v1187, %v1185
    %v1190 = vadd.f32 %v1152, %v1188
    %v1191 = vadd.f32 %v1153, %v1189
    %s1192 = sld [smem:[#allocation2 + $0x1c]]
    %v1193 = vstv %s1192
    %v1194 = vmul.f32 %v1193, %v1184
    %v1195 = vmul.f32 %v1193, %v1185
    %v1196 = vadd.f32 %v1164, %v1194
    %v1197 = vadd.f32 %v1165, %v1195
    %s1198 = sld [smem:[#allocation2 + $0x37]]
    %v1199 = vstv %s1198
    %v1200 = vmul.f32 %v1199, %v1184
    %v1201 = vmul.f32 %v1199, %v1185
    %v1202 = vadd.f32 %v1176, %v1200
    %v1203 = vadd.f32 %v1177, %v1201
    %s1204 = sld [smem:[#allocation2 + $0xa]]
    %v1205 = vstv %s1204
    %v1206 = vmul.f32 %v1205, %v1184
    %v1207 = vmul.f32 %v1205, %v1185
    %v1210 = vrot.slane %v1206, 1
    %v1211 = vrot.slane %v1207, 1
    %v1214 = vadd.f32 %v1190, %v1210
    %v1215 = vadd.f32 %v1191, %v1211
    %s1216 = sld [smem:[#allocation2 + $0x25]]
    %v1217 = vstv %s1216
    %v1218 = vmul.f32 %v1217, %v1184
    %v1219 = vmul.f32 %v1217, %v1185
    %v1222 = vrot.slane %v1218, 1
    %v1223 = vrot.slane %v1219, 1
    %v1226 = vadd.f32 %v1196, %v1222
    %v1227 = vadd.f32 %v1197, %v1223
    %s1228 = sld [smem:[#allocation2 + $0x40]]
    %v1229 = vstv %s1228
    %v1230 = vmul.f32 %v1229, %v1184
    %v1231 = vmul.f32 %v1229, %v1185
    %v1234 = vrot.slane %v1230, 1
    %v1235 = vrot.slane %v1231, 1
    %v1238 = vadd.f32 %v1202, %v1234
    %v1239 = vadd.f32 %v1203, %v1235
    %s1240 = sld [smem:[#allocation2 + $0x13]]
    %v1241 = vstv %s1240
    %v1242 = vmul.f32 %v1241, %v1184
    %v1243 = vmul.f32 %v1241, %v1185
    %v1246 = vrot.slane %v1242, 2
    %v1247 = vrot.slane %v1243, 2
    %v1250 = vadd.f32 %v1214, %v1246
    %v1251 = vadd.f32 %v1215, %v1247
    %s1252 = sld [smem:[#allocation2 + $0x2e]]
    %v1253 = vstv %s1252
    %v1254 = vmul.f32 %v1253, %v1184
    %v1255 = vmul.f32 %v1253, %v1185
    %v1258 = vrot.slane %v1254, 2
    %v1259 = vrot.slane %v1255, 2
    %v1262 = vadd.f32 %v1226, %v1258
    %v1263 = vadd.f32 %v1227, %v1259
    %s1264 = sld [smem:[#allocation2 + $0x49]]
    %v1265 = vstv %s1264
    %v1266 = vmul.f32 %v1265, %v1184
    %v1267 = vmul.f32 %v1265, %v1185
    %v1270 = vrot.slane %v1266, 2
    %v1271 = vrot.slane %v1267, 2
    %v1274 = vadd.f32 %v1238, %v1270
    %v1275 = vadd.f32 %v1239, %v1271
    %1276 = vrot.lane.b32.xlu0 %v1070, 15
    %v1277 = vpop.permute.xlu0 %1276
    %1278 = vrot.lane.b32.xlu0 %v1072, 15
    %v1279 = vpop.permute.xlu0 %1278
    %v1280 = vsel %vm262, %v1277, %v1279
    %v1281 = vsel %vm262, %v1279, %v1277
    %v1282 = vsel %vm267, %v1281, 0.0
    %v1283 = vsel %vm268, %v1280, 0.0
    %s1284 = sld [smem:[#allocation2 + $0x2]]
    %v1285 = vstv %s1284
    %v1286 = vmul.f32 %v1285, %v1282
    %v1287 = vmul.f32 %v1285, %v1283
    %v1288 = vadd.f32 %v1250, %v1286
    %v1289 = vadd.f32 %v1251, %v1287
    %s1290 = sld [smem:[#allocation2 + $0x1d]]
    %v1291 = vstv %s1290
    %v1292 = vmul.f32 %v1291, %v1282
    %v1293 = vmul.f32 %v1291, %v1283
    %v1294 = vadd.f32 %v1262, %v1292
    %v1295 = vadd.f32 %v1263, %v1293
    %s1296 = sld [smem:[#allocation2 + $0x38]]
    %v1297 = vstv %s1296
    %v1298 = vmul.f32 %v1297, %v1282
    %v1299 = vmul.f32 %v1297, %v1283
    %v1300 = vadd.f32 %v1274, %v1298
    %v1301 = vadd.f32 %v1275, %v1299
    %s1302 = sld [smem:[#allocation2 + $0xb]]
    %v1303 = vstv %s1302
    %v1304 = vmul.f32 %v1303, %v1282
    %v1305 = vmul.f32 %v1303, %v1283
    %v1308 = vrot.slane %v1304, 1
    %v1309 = vrot.slane %v1305, 1
    %v1312 = vadd.f32 %v1288, %v1308
    %v1313 = vadd.f32 %v1289, %v1309
    %s1314 = sld [smem:[#allocation2 + $0x26]]
    %v1315 = vstv %s1314
    %v1316 = vmul.f32 %v1315, %v1282
    %v1317 = vmul.f32 %v1315, %v1283
    %v1320 = vrot.slane %v1316, 1
    %v1321 = vrot.slane %v1317, 1
    %v1324 = vadd.f32 %v1294, %v1320
    %v1325 = vadd.f32 %v1295, %v1321
    %s1326 = sld [smem:[#allocation2 + $0x41]]
    %v1327 = vstv %s1326
    %v1328 = vmul.f32 %v1327, %v1282
    %v1329 = vmul.f32 %v1327, %v1283
    %v1332 = vrot.slane %v1328, 1
    %v1333 = vrot.slane %v1329, 1
    %v1336 = vadd.f32 %v1300, %v1332
    %v1337 = vadd.f32 %v1301, %v1333
    %s1338 = sld [smem:[#allocation2 + $0x14]]
    %v1339 = vstv %s1338
    %v1340 = vmul.f32 %v1339, %v1282
    %v1341 = vmul.f32 %v1339, %v1283
    %v1344 = vrot.slane %v1340, 2
    %v1345 = vrot.slane %v1341, 2
    %v1348 = vadd.f32 %v1312, %v1344
    %v1349 = vadd.f32 %v1313, %v1345
    %s1350 = sld [smem:[#allocation2 + $0x2f]]
    %v1351 = vstv %s1350
    %v1352 = vmul.f32 %v1351, %v1282
    %v1353 = vmul.f32 %v1351, %v1283
    %v1356 = vrot.slane %v1352, 2
    %v1357 = vrot.slane %v1353, 2
    %v1360 = vadd.f32 %v1324, %v1356
    %v1361 = vadd.f32 %v1325, %v1357
    %s1362 = sld [smem:[#allocation2 + $0x4a]]
    %v1363 = vstv %s1362
    %v1364 = vmul.f32 %v1363, %v1282
    %v1365 = vmul.f32 %v1363, %v1283
    %v1368 = vrot.slane %v1364, 2
    %v1369 = vrot.slane %v1365, 2
    %v1372 = vadd.f32 %v1336, %v1368
    %v1373 = vadd.f32 %v1337, %v1369
    %1374 = vrot.lane.b32.xlu0 %v1070, 1
    %v1375 = vpop.permute.xlu0 %1374
    %1376 = vrot.lane.b32.xlu0 %v1072, 1
    %v1377 = vpop.permute.xlu0 %1376
    %v1378 = vsel %vm365, %v1375, %v1377
    %v1379 = vsel %vm365, %v1377, %v1375
    %v1380 = vsel %vm57, %v1379, 0.0
    %v1381 = vsel %vm58, %v1378, 0.0
    %s1382 = sld [smem:[#allocation2 + $0x3]]
    %v1383 = vstv %s1382
    %v1384 = vmul.f32 %v1383, %v1380
    %v1385 = vmul.f32 %v1383, %v1381
    %v1386 = vadd.f32 %v1348, %v1384
    %v1387 = vadd.f32 %v1349, %v1385
    %s1388 = sld [smem:[#allocation2 + $0x1e]]
    %v1389 = vstv %s1388
    %v1390 = vmul.f32 %v1389, %v1380
    %v1391 = vmul.f32 %v1389, %v1381
    %v1392 = vadd.f32 %v1360, %v1390
    %v1393 = vadd.f32 %v1361, %v1391
    %s1394 = sld [smem:[#allocation2 + $0x39]]
    %v1395 = vstv %s1394
    %v1396 = vmul.f32 %v1395, %v1380
    %v1397 = vmul.f32 %v1395, %v1381
    %v1398 = vadd.f32 %v1372, %v1396
    %v1399 = vadd.f32 %v1373, %v1397
    %s1400 = sld [smem:[#allocation2 + $0xc]]
    %v1401 = vstv %s1400
    %v1402 = vmul.f32 %v1401, %v1380
    %v1403 = vmul.f32 %v1401, %v1381
    %v1406 = vrot.slane %v1402, 1
    %v1407 = vrot.slane %v1403, 1
    %v1410 = vadd.f32 %v1386, %v1406
    %v1411 = vadd.f32 %v1387, %v1407
    %s1412 = sld [smem:[#allocation2 + $0x27]]
    %v1413 = vstv %s1412
    %v1414 = vmul.f32 %v1413, %v1380
    %v1415 = vmul.f32 %v1413, %v1381
    %v1418 = vrot.slane %v1414, 1
    %v1419 = vrot.slane %v1415, 1
    %v1422 = vadd.f32 %v1392, %v1418
    %v1423 = vadd.f32 %v1393, %v1419
    %s1424 = sld [smem:[#allocation2 + $0x42]]
    %v1425 = vstv %s1424
    %v1426 = vmul.f32 %v1425, %v1380
    %v1427 = vmul.f32 %v1425, %v1381
    %v1430 = vrot.slane %v1426, 1
    %v1431 = vrot.slane %v1427, 1
    %v1434 = vadd.f32 %v1398, %v1430
    %v1435 = vadd.f32 %v1399, %v1431
    %s1436 = sld [smem:[#allocation2 + $0x15]]
    %v1437 = vstv %s1436
    %v1438 = vmul.f32 %v1437, %v1380
    %v1439 = vmul.f32 %v1437, %v1381
    %v1442 = vrot.slane %v1438, 2
    %v1443 = vrot.slane %v1439, 2
    %v1446 = vadd.f32 %v1410, %v1442
    %v1447 = vadd.f32 %v1411, %v1443
    %s1448 = sld [smem:[#allocation2 + $0x30]]
    %v1449 = vstv %s1448
    %v1450 = vmul.f32 %v1449, %v1380
    %v1451 = vmul.f32 %v1449, %v1381
    %v1454 = vrot.slane %v1450, 2
    %v1455 = vrot.slane %v1451, 2
    %v1458 = vadd.f32 %v1422, %v1454
    %v1459 = vadd.f32 %v1423, %v1455
    %s1460 = sld [smem:[#allocation2 + $0x4b]]
    %v1461 = vstv %s1460
    %v1462 = vmul.f32 %v1461, %v1380
    %v1463 = vmul.f32 %v1461, %v1381
    %v1466 = vrot.slane %v1462, 2
    %v1467 = vrot.slane %v1463, 2
    %v1470 = vadd.f32 %v1434, %v1466
    %v1471 = vadd.f32 %v1435, %v1467
    %s1472 = sld [smem:[#allocation2 + $0x4]]
    %v1473 = vstv %s1472
    %v1474 = vmul.f32 %v1473, %v1070
    %v1476 = vlaneseq
    %v1477 = vshrl.u32 %v1476, 7
    %v1478 = vsub.s32 0, %v1477
    %v1479 = vrot.slane %v1474, %v1478
    %v1480 = vlaneseq
    %v1481 = vshrl.u32 %v1480, 7
    %v1482 = vsub.s32 4, %v1481
    %v1483 = vrot.slane %v1474, %v1482
    %v1486 = vadd.f32 %v1446, %v1479
    %v1487 = vadd.f32 %v1447, %v1483
    %s1488 = sld [smem:[#allocation2 + $0x1f]]
    %v1489 = vstv %s1488
    %v1490 = vmul.f32 %v1489, %v1070
    %v1492 = vlaneseq
    %v1493 = vshrl.u32 %v1492, 7
    %v1494 = vsub.s32 0, %v1493
    %v1495 = vrot.slane %v1490, %v1494
    %v1496 = vlaneseq
    %v1497 = vshrl.u32 %v1496, 7
    %v1498 = vsub.s32 4, %v1497
    %v1499 = vrot.slane %v1490, %v1498
    %v1502 = vadd.f32 %v1458, %v1495
    %v1503 = vadd.f32 %v1459, %v1499
    %s1504 = sld [smem:[#allocation2 + $0x3a]]
    %v1505 = vstv %s1504
    %v1506 = vmul.f32 %v1505, %v1070
    %v1508 = vlaneseq
    %v1509 = vshrl.u32 %v1508, 7
    %v1510 = vsub.s32 0, %v1509
    %v1511 = vrot.slane %v1506, %v1510
    %v1512 = vlaneseq
    %v1513 = vshrl.u32 %v1512, 7
    %v1514 = vsub.s32 4, %v1513
    %v1515 = vrot.slane %v1506, %v1514
    %v1518 = vadd.f32 %v1470, %v1511
    %v1519 = vadd.f32 %v1471, %v1515
    %s1520 = sld [smem:[#allocation2 + $0xd]]
    %v1521 = vstv %s1520
    %v1522 = vmul.f32 %v1521, %v1070
    %v1524 = vlaneseq
    %v1525 = vshrl.u32 %v1524, 7
    %v1526 = vsub.s32 1, %v1525
    %v1527 = vrot.slane %v1522, %v1526
    %v1528 = vlaneseq
    %v1529 = vshrl.u32 %v1528, 7
    %v1530 = vsub.s32 5, %v1529
    %v1531 = vrot.slane %v1522, %v1530
    %v1534 = vadd.f32 %v1486, %v1527
    %v1535 = vadd.f32 %v1487, %v1531
    %s1536 = sld [smem:[#allocation2 + $0x28]]
    %v1537 = vstv %s1536
    %v1538 = vmul.f32 %v1537, %v1070
    %v1540 = vlaneseq
    %v1541 = vshrl.u32 %v1540, 7
    %v1542 = vsub.s32 1, %v1541
    %v1543 = vrot.slane %v1538, %v1542
    %v1544 = vlaneseq
    %v1545 = vshrl.u32 %v1544, 7
    %v1546 = vsub.s32 5, %v1545
    %v1547 = vrot.slane %v1538, %v1546
    %v1550 = vadd.f32 %v1502, %v1543
    %v1551 = vadd.f32 %v1503, %v1547
    %s1552 = sld [smem:[#allocation2 + $0x43]]
    %v1553 = vstv %s1552
    %v1554 = vmul.f32 %v1553, %v1070
    %v1556 = vlaneseq
    %v1557 = vshrl.u32 %v1556, 7
    %v1558 = vsub.s32 1, %v1557
    %v1559 = vrot.slane %v1554, %v1558
    %v1560 = vlaneseq
    %v1561 = vshrl.u32 %v1560, 7
    %v1562 = vsub.s32 5, %v1561
    %v1563 = vrot.slane %v1554, %v1562
    %v1566 = vadd.f32 %v1518, %v1559
    %v1567 = vadd.f32 %v1519, %v1563
    %s1568 = sld [smem:[#allocation2 + $0x16]]
    %v1569 = vstv %s1568
    %v1570 = vmul.f32 %v1569, %v1070
    %v1572 = vlaneseq
    %v1573 = vshrl.u32 %v1572, 7
    %v1574 = vsub.s32 2, %v1573
    %v1575 = vrot.slane %v1570, %v1574
    %v1576 = vlaneseq
    %v1577 = vshrl.u32 %v1576, 7
    %v1578 = vsub.s32 6, %v1577
    %v1579 = vrot.slane %v1570, %v1578
    %v1582 = vadd.f32 %v1534, %v1575
    %v1583 = vadd.f32 %v1535, %v1579
    %s1584 = sld [smem:[#allocation2 + $0x31]]
    %v1585 = vstv %s1584
    %v1586 = vmul.f32 %v1585, %v1070
    %v1588 = vlaneseq
    %v1589 = vshrl.u32 %v1588, 7
    %v1590 = vsub.s32 2, %v1589
    %v1591 = vrot.slane %v1586, %v1590
    %v1592 = vlaneseq
    %v1593 = vshrl.u32 %v1592, 7
    %v1594 = vsub.s32 6, %v1593
    %v1595 = vrot.slane %v1586, %v1594
    %v1598 = vadd.f32 %v1550, %v1591
    %v1599 = vadd.f32 %v1551, %v1595
    %s1600 = sld [smem:[#allocation2 + $0x4c]]
    %v1601 = vstv %s1600
    %v1602 = vmul.f32 %v1601, %v1070
    %v1604 = vlaneseq
    %v1605 = vshrl.u32 %v1604, 7
    %v1606 = vsub.s32 2, %v1605
    %v1607 = vrot.slane %v1602, %v1606
    %v1608 = vlaneseq
    %v1609 = vshrl.u32 %v1608, 7
    %v1610 = vsub.s32 6, %v1609
    %v1611 = vrot.slane %v1602, %v1610
    %v1614 = vadd.f32 %v1566, %v1607
    %v1615 = vadd.f32 %v1567, %v1611
    %1616 = vrot.lane.b32.xlu0 %v1070, 127
    %v1617 = vpop.permute.xlu0 %1616
    %1618 = vrot.lane.b32.xlu0 %v1072, 127
    %v1619 = vpop.permute.xlu0 %1618
    %v1620 = vsel %vm608, %v1617, %v1619
    %v1621 = vsel %vm608, %v1619, %v1617
    %v1622 = vsel %vm265, %v1620, 0.0
    %v1623 = vsel %vm266, %v1621, 0.0
    %s1624 = sld [smem:[#allocation2 + $0x5]]
    %v1625 = vstv %s1624
    %v1626 = vmul.f32 %v1625, %v1622
    %v1627 = vmul.f32 %v1625, %v1623
    %v1628 = vadd.f32 %v1582, %v1626
    %v1629 = vadd.f32 %v1583, %v1627
    %s1630 = sld [smem:[#allocation2 + $0x20]]
    %v1631 = vstv %s1630
    %v1632 = vmul.f32 %v1631, %v1622
    %v1633 = vmul.f32 %v1631, %v1623
    %v1634 = vadd.f32 %v1598, %v1632
    %v1635 = vadd.f32 %v1599, %v1633
    %s1636 = sld [smem:[#allocation2 + $0x3b]]
    %v1637 = vstv %s1636
    %v1638 = vmul.f32 %v1637, %v1622
    %v1639 = vmul.f32 %v1637, %v1623
    %v1640 = vadd.f32 %v1614, %v1638
    %v1641 = vadd.f32 %v1615, %v1639
    %s1642 = sld [smem:[#allocation2 + $0xe]]
    %v1643 = vstv %s1642
    %v1644 = vmul.f32 %v1643, %v1622
    %v1645 = vmul.f32 %v1643, %v1623
    %v1648 = vrot.slane %v1644, 1
    %v1649 = vrot.slane %v1645, 1
    %v1652 = vadd.f32 %v1628, %v1648
    %v1653 = vadd.f32 %v1629, %v1649
    %s1654 = sld [smem:[#allocation2 + $0x29]]
    %v1655 = vstv %s1654
    %v1656 = vmul.f32 %v1655, %v1622
    %v1657 = vmul.f32 %v1655, %v1623
    %v1660 = vrot.slane %v1656, 1
    %v1661 = vrot.slane %v1657, 1
    %v1664 = vadd.f32 %v1634, %v1660
    %v1665 = vadd.f32 %v1635, %v1661
    %s1666 = sld [smem:[#allocation2 + $0x44]]
    %v1667 = vstv %s1666
    %v1668 = vmul.f32 %v1667, %v1622
    %v1669 = vmul.f32 %v1667, %v1623
    %v1672 = vrot.slane %v1668, 1
    %v1673 = vrot.slane %v1669, 1
    %v1676 = vadd.f32 %v1640, %v1672
    %v1677 = vadd.f32 %v1641, %v1673
    %s1678 = sld [smem:[#allocation2 + $0x17]]
    %v1679 = vstv %s1678
    %v1680 = vmul.f32 %v1679, %v1622
    %v1681 = vmul.f32 %v1679, %v1623
    %v1684 = vrot.slane %v1680, 2
    %v1685 = vrot.slane %v1681, 2
    %v1688 = vadd.f32 %v1652, %v1684
    %v1689 = vadd.f32 %v1653, %v1685
    %s1690 = sld [smem:[#allocation2 + $0x32]]
    %v1691 = vstv %s1690
    %v1692 = vmul.f32 %v1691, %v1622
    %v1693 = vmul.f32 %v1691, %v1623
    %v1696 = vrot.slane %v1692, 2
    %v1697 = vrot.slane %v1693, 2
    %v1700 = vadd.f32 %v1664, %v1696
    %v1701 = vadd.f32 %v1665, %v1697
    %s1702 = sld [smem:[#allocation2 + $0x4d]]
    %v1703 = vstv %s1702
    %v1704 = vmul.f32 %v1703, %v1622
    %v1705 = vmul.f32 %v1703, %v1623
    %v1708 = vrot.slane %v1704, 2
    %v1709 = vrot.slane %v1705, 2
    %v1712 = vadd.f32 %v1676, %v1708
    %v1713 = vadd.f32 %v1677, %v1709
    %1714 = vrot.lane.b32.xlu0 %v1070, 113
    %v1715 = vpop.permute.xlu0 %1714
    %1716 = vrot.lane.b32.xlu0 %v1072, 113
    %v1717 = vpop.permute.xlu0 %1716
    %v1718 = vsel %vm707, %v1715, %v1717
    %v1719 = vsel %vm707, %v1717, %v1715
    %v1720 = vsel %vm712, %v1718, 0.0
    %v1721 = vsel %vm713, %v1719, 0.0
    %s1722 = sld [smem:[#allocation2 + $0x6]]
    %v1723 = vstv %s1722
    %v1724 = vmul.f32 %v1723, %v1720
    %v1725 = vmul.f32 %v1723, %v1721
    %v1726 = vadd.f32 %v1688, %v1724
    %v1727 = vadd.f32 %v1689, %v1725
    %s1728 = sld [smem:[#allocation2 + $0x21]]
    %v1729 = vstv %s1728
    %v1730 = vmul.f32 %v1729, %v1720
    %v1731 = vmul.f32 %v1729, %v1721
    %v1732 = vadd.f32 %v1700, %v1730
    %v1733 = vadd.f32 %v1701, %v1731
    %s1734 = sld [smem:[#allocation2 + $0x3c]]
    %v1735 = vstv %s1734
    %v1736 = vmul.f32 %v1735, %v1720
    %v1737 = vmul.f32 %v1735, %v1721
    %v1738 = vadd.f32 %v1712, %v1736
    %v1739 = vadd.f32 %v1713, %v1737
    %s1740 = sld [smem:[#allocation2 + $0xf]]
    %v1741 = vstv %s1740
    %v1742 = vmul.f32 %v1741, %v1720
    %v1743 = vmul.f32 %v1741, %v1721
    %v1746 = vrot.slane %v1742, 1
    %v1747 = vrot.slane %v1743, 1
    %v1750 = vadd.f32 %v1726, %v1746
    %v1751 = vadd.f32 %v1727, %v1747
    %s1752 = sld [smem:[#allocation2 + $0x2a]]
    %v1753 = vstv %s1752
    %v1754 = vmul.f32 %v1753, %v1720
    %v1755 = vmul.f32 %v1753, %v1721
    %v1758 = vrot.slane %v1754, 1
    %v1759 = vrot.slane %v1755, 1
    %v1762 = vadd.f32 %v1732, %v1758
    %v1763 = vadd.f32 %v1733, %v1759
    %s1764 = sld [smem:[#allocation2 + $0x45]]
    %v1765 = vstv %s1764
    %v1766 = vmul.f32 %v1765, %v1720
    %v1767 = vmul.f32 %v1765, %v1721
    %v1770 = vrot.slane %v1766, 1
    %v1771 = vrot.slane %v1767, 1
    %v1774 = vadd.f32 %v1738, %v1770
    %v1775 = vadd.f32 %v1739, %v1771
    %s1776 = sld [smem:[#allocation2 + $0x18]]
    %v1777 = vstv %s1776
    %v1778 = vmul.f32 %v1777, %v1720
    %v1779 = vmul.f32 %v1777, %v1721
    %v1782 = vrot.slane %v1778, 2
    %v1783 = vrot.slane %v1779, 2
    %v1786 = vadd.f32 %v1750, %v1782
    %v1787 = vadd.f32 %v1751, %v1783
    %s1788 = sld [smem:[#allocation2 + $0x33]]
    %v1789 = vstv %s1788
    %v1790 = vmul.f32 %v1789, %v1720
    %v1791 = vmul.f32 %v1789, %v1721
    %v1794 = vrot.slane %v1790, 2
    %v1795 = vrot.slane %v1791, 2
    %v1798 = vadd.f32 %v1762, %v1794
    %v1799 = vadd.f32 %v1763, %v1795
    %s1800 = sld [smem:[#allocation2 + $0x4e]]
    %v1801 = vstv %s1800
    %v1802 = vmul.f32 %v1801, %v1720
    %v1803 = vmul.f32 %v1801, %v1721
    %v1806 = vrot.slane %v1802, 2
    %v1807 = vrot.slane %v1803, 2
    %v1810 = vadd.f32 %v1774, %v1806
    %v1811 = vadd.f32 %v1775, %v1807
    %1812 = vrot.lane.b32.xlu0 %v1070, 112
    %v1813 = vpop.permute.xlu0 %1812
    %1814 = vrot.lane.b32.xlu0 %v1072, 112
    %v1815 = vpop.permute.xlu0 %1814
    %v1816 = vsel %vm810, %v1813, %v1815
    %v1817 = vsel %vm810, %v1815, %v1813
    %v1818 = vsel %vm710, %v1816, 0.0
    %v1819 = vsel %vm711, %v1817, 0.0
    %s1820 = sld [smem:[#allocation2 + $0x7]]
    %v1821 = vstv %s1820
    %v1822 = vmul.f32 %v1821, %v1818
    %v1823 = vmul.f32 %v1821, %v1819
    %v1824 = vadd.f32 %v1786, %v1822
    %v1825 = vadd.f32 %v1787, %v1823
    %s1826 = sld [smem:[#allocation2 + $0x22]]
    %v1827 = vstv %s1826
    %v1828 = vmul.f32 %v1827, %v1818
    %v1829 = vmul.f32 %v1827, %v1819
    %v1830 = vadd.f32 %v1798, %v1828
    %v1831 = vadd.f32 %v1799, %v1829
    %s1832 = sld [smem:[#allocation2 + $0x3d]]
    %v1833 = vstv %s1832
    %v1834 = vmul.f32 %v1833, %v1818
    %v1835 = vmul.f32 %v1833, %v1819
    %v1836 = vadd.f32 %v1810, %v1834
    %v1837 = vadd.f32 %v1811, %v1835
    %s1838 = sld [smem:[#allocation2 + $0x10]]
    %v1839 = vstv %s1838
    %v1840 = vmul.f32 %v1839, %v1818
    %v1841 = vmul.f32 %v1839, %v1819
    %v1844 = vrot.slane %v1840, 1
    %v1845 = vrot.slane %v1841, 1
    %v1848 = vadd.f32 %v1824, %v1844
    %v1849 = vadd.f32 %v1825, %v1845
    %s1850 = sld [smem:[#allocation2 + $0x2b]]
    %v1851 = vstv %s1850
    %v1852 = vmul.f32 %v1851, %v1818
    %v1853 = vmul.f32 %v1851, %v1819
    %v1856 = vrot.slane %v1852, 1
    %v1857 = vrot.slane %v1853, 1
    %v1860 = vadd.f32 %v1830, %v1856
    %v1861 = vadd.f32 %v1831, %v1857
    %s1862 = sld [smem:[#allocation2 + $0x46]]
    %v1863 = vstv %s1862
    %v1864 = vmul.f32 %v1863, %v1818
    %v1865 = vmul.f32 %v1863, %v1819
    %v1868 = vrot.slane %v1864, 1
    %v1869 = vrot.slane %v1865, 1
    %v1872 = vadd.f32 %v1836, %v1868
    %v1873 = vadd.f32 %v1837, %v1869
    %s1874 = sld [smem:[#allocation2 + $0x19]]
    %v1875 = vstv %s1874
    %v1876 = vmul.f32 %v1875, %v1818
    %v1877 = vmul.f32 %v1875, %v1819
    %v1880 = vrot.slane %v1876, 2
    %v1881 = vrot.slane %v1877, 2
    %v1884 = vadd.f32 %v1848, %v1880
    %v1885 = vadd.f32 %v1849, %v1881
    %s1886 = sld [smem:[#allocation2 + $0x34]]
    %v1887 = vstv %s1886
    %v1888 = vmul.f32 %v1887, %v1818
    %v1889 = vmul.f32 %v1887, %v1819
    %v1892 = vrot.slane %v1888, 2
    %v1893 = vrot.slane %v1889, 2
    %v1896 = vadd.f32 %v1860, %v1892
    %v1897 = vadd.f32 %v1861, %v1893
    %s1898 = sld [smem:[#allocation2 + $0x4f]]
    %v1899 = vstv %s1898
    %v1900 = vmul.f32 %v1899, %v1818
    %v1901 = vmul.f32 %v1899, %v1819
    %v1904 = vrot.slane %v1900, 2
    %v1905 = vrot.slane %v1901, 2
    %v1908 = vadd.f32 %v1872, %v1904
    %v1909 = vadd.f32 %v1873, %v1905
    %1910 = vrot.lane.b32.xlu0 %v1070, 111
    %v1911 = vpop.permute.xlu0 %1910
    %1912 = vrot.lane.b32.xlu0 %v1072, 111
    %v1913 = vpop.permute.xlu0 %1912
    %v1914 = vsel %vm909, %v1911, %v1913
    %v1915 = vsel %vm909, %v1913, %v1911
    %v1916 = vsel %vm912, %v1914, 0.0
    %v1917 = vsel %vm913, %v1915, 0.0
    %s1918 = sld [smem:[#allocation2 + $0x8]]
    %v1919 = vstv %s1918
    %v1920 = vmul.f32 %v1919, %v1916
    %v1921 = vmul.f32 %v1919, %v1917
    %v1922 = vadd.f32 %v1884, %v1920
    %v1923 = vadd.f32 %v1885, %v1921
    %s1924 = sld [smem:[#allocation2 + $0x23]]
    %v1925 = vstv %s1924
    %v1926 = vmul.f32 %v1925, %v1916
    %v1927 = vmul.f32 %v1925, %v1917
    %v1928 = vadd.f32 %v1896, %v1926
    %v1929 = vadd.f32 %v1897, %v1927
    %s1930 = sld [smem:[#allocation2 + $0x3e]]
    %v1931 = vstv %s1930
    %v1932 = vmul.f32 %v1931, %v1916
    %v1933 = vmul.f32 %v1931, %v1917
    %v1934 = vadd.f32 %v1908, %v1932
    %v1935 = vadd.f32 %v1909, %v1933
    %s1936 = sld [smem:[#allocation2 + $0x11]]
    %v1937 = vstv %s1936
    %v1938 = vmul.f32 %v1937, %v1916
    %v1939 = vmul.f32 %v1937, %v1917
    %v1942 = vrot.slane %v1938, 1
    %v1943 = vrot.slane %v1939, 1
    %v1946 = vadd.f32 %v1922, %v1942
    %v1947 = vadd.f32 %v1923, %v1943
    %s1948 = sld [smem:[#allocation2 + $0x2c]]
    %v1949 = vstv %s1948
    %v1950 = vmul.f32 %v1949, %v1916
    %v1951 = vmul.f32 %v1949, %v1917
    %v1954 = vrot.slane %v1950, 1
    %v1955 = vrot.slane %v1951, 1
    %v1958 = vadd.f32 %v1928, %v1954
    %v1959 = vadd.f32 %v1929, %v1955
    %s1960 = sld [smem:[#allocation2 + $0x47]]
    %v1961 = vstv %s1960
    %v1962 = vmul.f32 %v1961, %v1916
    %v1963 = vmul.f32 %v1961, %v1917
    %v1966 = vrot.slane %v1962, 1
    %v1967 = vrot.slane %v1963, 1
    %v1970 = vadd.f32 %v1934, %v1966
    %v1971 = vadd.f32 %v1935, %v1967
    %s1972 = sld [smem:[#allocation2 + $0x1a]]
    %v1973 = vstv %s1972
    %v1974 = vmul.f32 %v1973, %v1916
    %v1975 = vmul.f32 %v1973, %v1917
    %v1978 = vrot.slane %v1974, 2
    %v1979 = vrot.slane %v1975, 2
    %v1982 = vadd.f32 %v1946, %v1978
    %v1983 = vadd.f32 %v1947, %v1979
    %s1984 = sld [smem:[#allocation2 + $0x35]]
    %v1985 = vstv %s1984
    %v1986 = vmul.f32 %v1985, %v1916
    %v1987 = vmul.f32 %v1985, %v1917
    %v1990 = vrot.slane %v1986, 2
    %v1991 = vrot.slane %v1987, 2
    %v1994 = vadd.f32 %v1958, %v1990
    %v1995 = vadd.f32 %v1959, %v1991
    %s1996 = sld [smem:[#allocation2 + $0x50]]
    %v1997 = vstv %s1996
    %v1998 = vmul.f32 %v1997, %v1916
    %v1999 = vmul.f32 %v1997, %v1917
    %v2002 = vrot.slane %v1998, 2
    %v2003 = vrot.slane %v1999, 2
    %v2006 = vadd.f32 %v1970, %v2002
    %v2007 = vadd.f32 %v1971, %v2003
    %v2010 = vcombine.low %v1982, %v1983
    %v2012 = vunpack.c.l.s4 1966171168
    %v2013 = vunpack.c.0.s8 %v2012
    %v2014 = vlaneseq
    %v2015 = vshrl.u32 %v2014, 7
    %v2016 = vsub.s32 %v2013, %v2015
    %v2017 = vrot.slane %v2010, %v2016
    %v2019 = vunpack.c.l.s4 1966171168
    %v2020 = vunpack.c.0.s8 %v2019
    %v2021 = vlaneseq
    %v2022 = vshrl.u32 %v2021, 7
    %v2023 = vsub.s32 %v2020, %v2022
    %v2024 = vrot.slane %v2017, %v2023
    %s2026 = scalar_lea.vmem %s3, 8
    %2027 = vst.msk [vmem:[%s2026] ss:$4 sm:$0x3] %vm1027, %v2024
    %v2030 = vcombine.low %v1994, %v1995
    %v2032 = vunpack.c.l.s4 1966171168
    %v2033 = vunpack.c.0.s8 %v2032
    %v2034 = vlaneseq
    %v2035 = vshrl.u32 %v2034, 7
    %v2036 = vsub.s32 %v2033, %v2035
    %v2037 = vrot.slane %v2030, %v2036
    %v2039 = vunpack.c.l.s4 1966171168
    %v2040 = vunpack.c.0.s8 %v2039
    %v2041 = vlaneseq
    %v2042 = vshrl.u32 %v2041, 7
    %v2043 = vsub.s32 %v2040, %v2042
    %v2044 = vrot.slane %v2037, %v2043
    %s2046 = scalar_lea.vmem %s2026, 1
    %2047 = vst.msk [vmem:[%s2046] ss:$4 sm:$0x3] %vm1027, %v2044
    %v2050 = vcombine.low %v2006, %v2007
    %v2052 = vunpack.c.l.s4 1966171168
    %v2053 = vunpack.c.0.s8 %v2052
    %v2054 = vlaneseq
    %v2055 = vshrl.u32 %v2054, 7
    %v2056 = vsub.s32 %v2053, %v2055
    %v2057 = vrot.slane %v2050, %v2056
    %v2059 = vunpack.c.l.s4 1966171168
    %v2060 = vunpack.c.0.s8 %v2059
    %v2061 = vlaneseq
    %v2062 = vshrl.u32 %v2061, 7
    %v2063 = vsub.s32 %v2060, %v2062
    %v2064 = vrot.slane %v2057, %v2063
    %s2066 = scalar_lea.vmem %s2026, 2
    %2067 = vst.msk [vmem:[%s2066] ss:$4 sm:$0x3] %vm1027, %v2064
    // Predicated region
    $region22: #{tpu_custom_call.1} parent=1 // pred_check
      _
    $region23: #{tpu_custom_call.1} parent=1 // pred_check_branch
      %2069 = sbr.rel (0) target = $region25
    $region24: #{tpu_custom_call.1} parent=1 // pred_region
      _
    $region25: #{tpu_custom_call.1} parent=1 // pred_fallthru
      _
    // Predicated region
    $region26: #{tpu_custom_call.1} parent=1 // pred_check
      _
    $region27: #{tpu_custom_call.1} parent=1 // pred_check_branch
      %2071 = sbr.rel (0) target = $region29
    $region28: #{tpu_custom_call.1} parent=1 // pred_region
      _
    $region29: #{tpu_custom_call.1} parent=1 // pred_fallthru
      _
    %2072 = vsyncpa [#allocation3], 1
    %2073 = vsyncpa [#allocation5], 1

</llo_original>
